<compile_context>
chip_gen: v7x
topology: tpu7x:2x2x1
jax: 0.10.0
libtpu: 0.0.40
codegen_flags: <defaults>
</compile_context>

<pallas_src>
import functools

import jax
import jax.numpy as jnp
from jax import lax
from jax.experimental import pallas as pl
from jax.experimental.pallas import tpu as pltpu


# ----------------------------------------------------------------------------
# Fused kernel: [mean-pool ->] x@W1+b1 -> ReLU -> h@W2+b2 -> LayerNorm
# One grid step handles `tm` batch rows; weights are VMEM-resident blocks.
# ----------------------------------------------------------------------------
def _encoder_kernel(x_ref, w1_ref, b1_ref, w2_ref, b2_ref, g_ref, bln_ref,
                    o_ref, *, inv_seq, eps, mxu_dtype):
    if len(x_ref.shape) == 3:
        # Mean-pool over the sequence axis.  Accumulate (tm, Din) slices so we
        # never materialize an f32 copy of the whole (tm, S, Din) tile.
        seq = x_ref.shape[1]
        if seq <= 32:
            pooled = x_ref[:, 0, :].astype(jnp.float32)
            for s in range(1, seq):
                pooled = pooled + x_ref[:, s, :].astype(jnp.float32)
        else:
            pooled = jnp.sum(x_ref[...], axis=1, dtype=jnp.float32)
        lhs = (pooled * inv_seq).astype(mxu_dtype)
    else:
        # Mean-pool already folded into W1 wrapper-side (lane-dense path).
        lhs = x_ref[...].astype(mxu_dtype)

    # Linear 1 + ReLU.  nn.Dropout is identity in eval mode.
    # TODO(synk): training-mode dropout would need pltpu.prng_* masking here.
    h = jnp.dot(lhs, w1_ref[...], preferred_element_type=jnp.float32)
    h = jnp.maximum(h + b1_ref[...], 0.0)

    # Linear 2 (f32 accumulation on the MXU).
    y = jnp.dot(h.astype(mxu_dtype), w2_ref[...],
                preferred_element_type=jnp.float32)
    y = y + b2_ref[...]

    # LayerNorm over the feature (lane) axis; gamma folded into the rsqrt scale.
    mu = jnp.mean(y, axis=-1, keepdims=True)
    yc = y - mu
    var = jnp.mean(yc * yc, axis=-1, keepdims=True)
    scale = g_ref[...] * lax.rsqrt(var + eps)
    o_ref[...] = (yc * scale + bln_ref[...]).astype(o_ref.dtype)


# ----------------------------------------------------------------------------
# Wrapper-side helpers
# ----------------------------------------------------------------------------
def _fold_mean_pool(x3d, w1):
    """Return (x2d, w1_eff) such that x2d @ w1_eff == mean(x3d, axis=1) @ w1."""
    b, s, din = x3d.shape
    x2d = x3d.reshape(b, s * din)                 # free: row-major contiguous
    w1_eff = jnp.tile(w1, (s, 1)) * (1.0 / s)     # (S*Din, H)
    return x2d, w1_eff


def _vmem_limit_bytes():
    """Explicit scoped-VMEM request (defaults are only 16/32 MiB; v7x physical
    VMEM is 64 MiB per TensorCore)."""
    phys = 64 * 1024 * 1024                       # conservative: v7x per-TC VMEM
    try:
        phys = int(getattr(pltpu.get_tpu_info(), "vmem_capacity_bytes", phys))
    except Exception:
        pass
    return min(phys // 2, 64 * 1024 * 1024)       # 64 MiB v5e/v6e, 32 MiB v7x


def _pick_row_tile(batch, per_row_bytes, budget_bytes, min_tile):
    """Largest row tile (multiple of min_tile) whose blocks fit the VMEM budget,
    capped so the grid keeps >= 2 steps whenever the batch allows it
    (pipelining + both v7x TensorCores get work)."""
    tm = max(min_tile, budget_bytes // max(per_row_bytes, 1))
    tm = min(tm, 1024)
    if batch >= 2 * min_tile:
        tm = min(tm, (batch + 1) // 2)            # ceil(batch/2): >= 2 grid steps
    else:
        tm = min_tile
    return int(max(min_tile, (tm // min_tile) * min_tile))


def modality_encoder_forward(x, w1, b1, w2, b2, gamma, beta, *, eps=1e-5,
                             mxu_dtype=jnp.bfloat16):
    """x: [B, S, Din] or [B, Din] -> [B, Dout] in a single fused pallas_call."""
    out_dtype = x.dtype
    if x.ndim == 2:
        x = x[:, None, :]
    B, S, Din = x.shape
    H = w1.shape[-1]
    Dout = w2.shape[-1]

    mxu_dtype = jnp.dtype(mxu_dtype)
    w_b = mxu_dtype.itemsize
    x_b = x.dtype.itemsize
    o_b = jnp.dtype(out_dtype).itemsize

    # Fold the mean-pool into the first matmul when Din is narrower than a
    # vreg lane: lane-dense loads, no XLU reduce, larger MXU contraction dim.
    fold_pool = (S == 1) or (Din < 128 and S * Din * H * w_b <= (4 << 20))
    if fold_pool:
        x_op, w1_op = _fold_mean_pool(x, w1)
        k1 = S * Din
    else:
        x_op, w1_op = x, w1
        k1 = Din
    w1_op = w1_op.astype(mxu_dtype)
    w2_op = w2.astype(mxu_dtype)
    b1 = jnp.reshape(b1, (1, H)).astype(jnp.float32)
    b2 = jnp.reshape(b2, (1, Dout)).astype(jnp.float32)
    gamma = jnp.reshape(gamma, (1, Dout)).astype(jnp.float32)
    beta = jnp.reshape(beta, (1, Dout)).astype(jnp.float32)

    # --- VMEM-budgeted row tiling --------------------------------------------
    # Per-row cost: double-buffered input/output blocks + f32/bf16 intermediates.
    per_row = (2 * S * Din * x_b + 2 * Dout * o_b
               + 4 * (Din + 2 * H + 4 * Dout) + w_b * (S * Din + H))
    # Resident weights/biases (budgeted as double-buffered, the safe default).
    weight_bytes = 2 * ((k1 * H + H * Dout) * w_b + (H + 3 * Dout) * 4)
    # TODO(synk): for multi-MiB weight matrices, add a Dout grid axis and/or a
    # K-tiled accumulation instead of keeping full W1/W2 blocks resident.

    min_tile = 16 if min(x_b, o_b) < 4 else 8     # bf16 (16,128) sublane packing
    vmem_limit = _vmem_limit_bytes()
    budget = (3 * vmem_limit) // 4 - weight_bytes
    tm = _pick_row_tile(B, per_row, budget, min_tile)
    steps = pl.cdiv(B, tm)
    Bp = steps * tm
    vmem_limit = max(vmem_limit, int(1.25 * (weight_bytes + tm * per_row)))

    if Bp != B:                                   # pad; padded rows sliced off
        pad = ((0, Bp - B),) + ((0, 0),) * (x_op.ndim - 1)
        x_op = jnp.pad(x_op, pad)

    kernel = functools.partial(_encoder_kernel, inv_seq=1.0 / S, eps=float(eps),
                               mxu_dtype=mxu_dtype)

    def launch(single_buffer_weights):
        def w_spec(arr):
            imap = lambda i: (0, 0)               # grid-invariant operand
            if single_buffer_weights:
                return pl.BlockSpec(arr.shape, imap, pipeline_mode=pl.Buffered(1))
            return pl.BlockSpec(arr.shape, imap)

        if fold_pool:
            x_spec = pl.BlockSpec((tm, S * Din), lambda i: (i, 0))
        else:
            x_spec = pl.BlockSpec((tm, S, Din), lambda i: (i, 0, 0))

        # TODO(synk): for Dout < 128, pack k=128//Dout batch rows per output row
        # (lane-dense unmasked stores) instead of masked (tm, Dout) stores.
        return pl.pallas_call(
            kernel,
            out_shape=jax.ShapeDtypeStruct((Bp, Dout), out_dtype),
            grid=(steps,),
            in_specs=[x_spec, w_spec(w1_op), w_spec(b1), w_spec(w2_op),
                      w_spec(b2), w_spec(gamma), w_spec(beta)],
            out_specs=pl.BlockSpec((tm, Dout), lambda i: (i, 0)),
            compiler_params=pltpu.CompilerParams(
                dimension_semantics=("parallel",),
                vmem_limit_bytes=int(vmem_limit)),
        )(x_op, w1_op, b1, w2_op, b2, gamma, beta)

    try:
        out = launch(single_buffer_weights=True)
    except Exception:
        # pl.Buffered(1) unsupported on this JAX/libtpu: default double buffering.
        out = launch(single_buffer_weights=False)

    return out[:B] if Bp != B else out


# ----------------------------------------------------------------------------
# Module wrapper (parameter init mirroring nn.Linear / nn.LayerNorm defaults)
# ----------------------------------------------------------------------------
class ModalityEncoderPallas:
    def __init__(self, input_dim, hidden_dim, output_dim, dropout=0.3,
                 is_sequential=False, key=None):
        # TODO(synk): is_sequential=True (bidirectional LSTM/GRU seq_processor)
        # is not supported; 3-D inputs use the module's mean-pool branch.
        del dropout, is_sequential
        if key is None:
            key = jax.random.PRNGKey(42)
        self.input_dim = input_dim
        self.output_dim = output_dim

        def init_linear(k, din, dout):
            kw, kb = jax.random.split(k)
            bound = 1.0 / (din ** 0.5)
            w = jax.random.uniform(kw, (din, dout), jnp.float32, -bound, bound)
            b = jax.random.uniform(kb, (1, dout), jnp.float32, -bound, bound)
            return w, b

        k1, k2 = jax.random.split(key)
        self.w1, self.b1 = init_linear(k1, input_dim, hidden_dim)
        self.w2, self.b2 = init_linear(k2, hidden_dim, output_dim)
        self.gamma = jnp.ones((1, output_dim), jnp.float32)
        self.beta = jnp.zeros((1, output_dim), jnp.float32)
        self.eps = 1e-5

    def __call__(self, x, mxu_dtype=jnp.bfloat16):
        return modality_encoder_forward(
            x, self.w1, self.b1, self.w2, self.b2, self.gamma, self.beta,
            eps=self.eps, mxu_dtype=mxu_dtype)


# ----------------------------------------------------------------------------
# Pure-JAX references for verification
# ----------------------------------------------------------------------------
def reference_forward(x, w1, b1, w2, b2, gamma, beta, eps=1e-5):
    """Module-faithful f32 reference (eval mode, mean-pool path)."""
    if x.ndim == 3:
        x = jnp.mean(x, axis=1)
    h = jnp.maximum(jnp.dot(x, w1, precision=lax.Precision.HIGHEST) + b1, 0.0)
    y = jnp.dot(h, w2, precision=lax.Precision.HIGHEST) + b2
    mu = jnp.mean(y, axis=-1, keepdims=True)
    var = jnp.mean(jnp.square(y - mu), axis=-1, keepdims=True)
    return (y - mu) * lax.rsqrt(var + eps) * gamma + beta


def _matched_bf16_reference(x, w1, b1, w2, b2, gamma, beta, eps=1e-5):
    """Mirror of the kernel's bf16-MXU math (fold + casts) for a tight check."""
    x2d, w1_eff = _fold_mean_pool(x, w1)
    h = jnp.dot(x2d.astype(jnp.bfloat16), w1_eff.astype(jnp.bfloat16),
                preferred_element_type=jnp.float32) + b1
    h = jnp.maximum(h, 0.0)
    y = jnp.dot(h.astype(jnp.bfloat16), w2.astype(jnp.bfloat16),
                preferred_element_type=jnp.float32) + b2
    mu = jnp.mean(y, axis=-1, keepdims=True)
    yc = y - mu
    var = jnp.mean(yc * yc, axis=-1, keepdims=True)
    return yc * (gamma * lax.rsqrt(var + eps)) + beta


if __name__ == "__main__":
    # Small shapes consistent with the module's forward: 3-D sequential input
    # mean-pooled (folded contraction dim = S*Din = 128, lane-dense features).
    B, S = 64, 8
    input_dim, hidden_dim, output_dim = 16, 128, 128

    root = jax.random.PRNGKey(0)
    kx, kp = jax.random.split(root)
    x = jax.random.normal(kx, (B, S, input_dim), jnp.float32)

    enc = ModalityEncoderPallas(input_dim, hidden_dim, output_dim, key=kp)
    ref = reference_forward(x, enc.w1, enc.b1, enc.w2, enc.b2,
                            enc.gamma, enc.beta, eps=enc.eps)

    # Default path: bf16 MXU inputs, f32 accumulation.
    out = jax.block_until_ready(enc(x))
    assert out.shape == (B, output_dim)
    matched = _matched_bf16_reference(x, enc.w1, enc.b1, enc.w2, enc.b2,
                                      enc.gamma, enc.beta, eps=enc.eps)
    assert jnp.allclose(out, matched, atol=1e-2, rtol=1e-2), \
        "bf16 kernel mismatch vs matched bf16 reference"
    assert float(jnp.max(jnp.abs(out - ref))) < 0.3, \
        "bf16 kernel deviates too far from the f32 module reference"

    # Full-f32 operand path (module-precision mode); default MXU f32 precision
    # may be bf16-decomposed, so check at bf16-level tolerance.
    out_f32 = jax.block_until_ready(enc(x, mxu_dtype=jnp.float32))
    assert out_f32.shape == (B, output_dim)
    assert float(jnp.max(jnp.abs(out_f32 - ref))) < 0.3, \
        "f32 kernel deviates from the module reference"

    print("KERNEL_OK")
</pallas_src>

<mosaic_0001>
module attributes {stable_mosaic.version = 11 : i64} {
  func.func @_encoder_kernel(%arg0: i32, %arg1: memref<32x128xf32, #tpu.memory_space<vmem>>, %arg2: memref<128x128xbf16, #tpu.memory_space<vmem>>, %arg3: memref<1x128xf32, #tpu.memory_space<vmem>>, %arg4: memref<128x128xbf16, #tpu.memory_space<vmem>>, %arg5: memref<1x128xf32, #tpu.memory_space<vmem>>, %arg6: memref<1x128xf32, #tpu.memory_space<vmem>>, %arg7: memref<1x128xf32, #tpu.memory_space<vmem>>, %arg8: memref<32x128xf32, #tpu.memory_space<vmem>>) attributes {dimension_semantics = [#tpu.dimension_semantics<parallel>], iteration_bounds = array<i64: 2>, scalar_prefetch = 0 : i64, scratch_operands = 0 : i64, tpu.core_type = #tpu.core_type<tc>, window_params = [{transform_indices = @transform_0, window_bounds = array<i64: 32, 128>}, {pipeline_mode = #tpu.pipeline_mode<synchronous>, transform_indices = @transform_1, window_bounds = array<i64: 128, 128>}, {pipeline_mode = #tpu.pipeline_mode<synchronous>, transform_indices = @transform_2, window_bounds = array<i64: 1, 128>}, {pipeline_mode = #tpu.pipeline_mode<synchronous>, transform_indices = @transform_3, window_bounds = array<i64: 128, 128>}, {pipeline_mode = #tpu.pipeline_mode<synchronous>, transform_indices = @transform_4, window_bounds = array<i64: 1, 128>}, {pipeline_mode = #tpu.pipeline_mode<synchronous>, transform_indices = @transform_5, window_bounds = array<i64: 1, 128>}, {pipeline_mode = #tpu.pipeline_mode<synchronous>, transform_indices = @transform_6, window_bounds = array<i64: 1, 128>}, {transform_indices = @transform_7, window_bounds = array<i64: 32, 128>}]} {
    %c0 = arith.constant 0 : index
    %c0_0 = arith.constant 0 : index
    %0 = vector.load %arg1[%c0, %c0_0] : memref<32x128xf32, #tpu.memory_space<vmem>>, vector<32x128xf32>
    %1 = arith.truncf %0 : vector<32x128xf32> to vector<32x128xbf16>
    %c0_1 = arith.constant 0 : index
    %c0_2 = arith.constant 0 : index
    %2 = vector.load %arg2[%c0_1, %c0_2] : memref<128x128xbf16, #tpu.memory_space<vmem>>, vector<128x128xbf16>
    %cst = arith.constant dense<0.000000e+00> : vector<32x128xf32>
    %3 = tpu.matmul %1, %2, %cst {dimension_numbers = #tpu.dot_dimension_numbers<[1], [0], [0], [1], [0, 0, 1, 1], [], []>} : vector<32x128xbf16>, vector<128x128xbf16>, vector<32x128xf32> -> vector<32x128xf32>
    %c0_3 = arith.constant 0 : index
    %c0_4 = arith.constant 0 : index
    %4 = vector.load %arg3[%c0_3, %c0_4] : memref<1x128xf32, #tpu.memory_space<vmem>>, vector<1x128xf32>
    %5 = vector.broadcast %4 : vector<1x128xf32> to vector<32x128xf32>
    %6 = arith.addf %3, %5 : vector<32x128xf32>
    %cst_5 = arith.constant 0.000000e+00 : f32
    %7 = vector.broadcast %cst_5 : f32 to vector<32x128xf32>
    %8 = arith.maximumf %6, %7 : vector<32x128xf32>
    %9 = arith.truncf %8 : vector<32x128xf32> to vector<32x128xbf16>
    %c0_6 = arith.constant 0 : index
    %c0_7 = arith.constant 0 : index
    %10 = vector.load %arg4[%c0_6, %c0_7] : memref<128x128xbf16, #tpu.memory_space<vmem>>, vector<128x128xbf16>
    %cst_8 = arith.constant dense<0.000000e+00> : vector<32x128xf32>
    %11 = tpu.matmul %9, %10, %cst_8 {dimension_numbers = #tpu.dot_dimension_numbers<[1], [0], [0], [1], [0, 0, 1, 1], [], []>} : vector<32x128xbf16>, vector<128x128xbf16>, vector<32x128xf32> -> vector<32x128xf32>
    %c0_9 = arith.constant 0 : index
    %c0_10 = arith.constant 0 : index
    %12 = vector.load %arg5[%c0_9, %c0_10] : memref<1x128xf32, #tpu.memory_space<vmem>>, vector<1x128xf32>
    %13 = vector.broadcast %12 : vector<1x128xf32> to vector<32x128xf32>
    %14 = arith.addf %11, %13 : vector<32x128xf32>
    %cst_11 = arith.constant dense<0.000000e+00> : vector<32xf32>
    %15 = vector.multi_reduction <add>, %14, %cst_11 [1] : vector<32x128xf32> to vector<32xf32>
    %16 = vector.shape_cast %15 : vector<32xf32> to vector<32x1xf32>
    %cst_12 = arith.constant 1.280000e+02 : f32
    %17 = vector.broadcast %cst_12 : f32 to vector<32x1xf32>
    %18 = arith.divf %16, %17 : vector<32x1xf32>
    %19 = vector.broadcast %18 : vector<32x1xf32> to vector<32x128xf32>
    %20 = arith.subf %14, %19 : vector<32x128xf32>
    %21 = arith.mulf %20, %20 : vector<32x128xf32>
    %cst_13 = arith.constant dense<0.000000e+00> : vector<32xf32>
    %22 = vector.multi_reduction <add>, %21, %cst_13 [1] : vector<32x128xf32> to vector<32xf32>
    %23 = vector.shape_cast %22 : vector<32xf32> to vector<32x1xf32>
    %cst_14 = arith.constant 1.280000e+02 : f32
    %24 = vector.broadcast %cst_14 : f32 to vector<32x1xf32>
    %25 = arith.divf %23, %24 : vector<32x1xf32>
    %c0_15 = arith.constant 0 : index
    %c0_16 = arith.constant 0 : index
    %26 = vector.load %arg6[%c0_15, %c0_16] : memref<1x128xf32, #tpu.memory_space<vmem>>, vector<1x128xf32>
    %cst_17 = arith.constant 9.99999974E-6 : f32
    %27 = vector.broadcast %cst_17 : f32 to vector<32x1xf32>
    %28 = arith.addf %25, %27 : vector<32x1xf32>
    %29 = math.rsqrt %28 : vector<32x1xf32>
    %30 = vector.broadcast %26 : vector<1x128xf32> to vector<32x128xf32>
    %31 = vector.broadcast %29 : vector<32x1xf32> to vector<32x128xf32>
    %32 = arith.mulf %30, %31 : vector<32x128xf32>
    %33 = arith.mulf %20, %32 : vector<32x128xf32>
    %c0_18 = arith.constant 0 : index
    %c0_19 = arith.constant 0 : index
    %34 = vector.load %arg7[%c0_18, %c0_19] : memref<1x128xf32, #tpu.memory_space<vmem>>, vector<1x128xf32>
    %35 = vector.broadcast %34 : vector<1x128xf32> to vector<32x128xf32>
    %36 = arith.addf %33, %35 : vector<32x128xf32>
    %c0_20 = arith.constant 0 : index
    %c0_21 = arith.constant 0 : index
    %37 = vector.load %arg8[%c0_20, %c0_21] : memref<32x128xf32, #tpu.memory_space<vmem>>, vector<32x128xf32>
    tpu.vector_store %arg8[%c0_20, %c0_21], %36 {strides = array<i32>} : memref<32x128xf32, #tpu.memory_space<vmem>>, vector<32x128xf32>,
    return
  }
  func.func @transform_0(%arg0: i32) -> (i32, i32) {
    %c0_i32 = arith.constant 0 : i32
    %c0_i32_0 = arith.constant 0 : i32
    return %arg0, %c0_i32 : i32, i32
  }
  func.func @transform_1(%arg0: i32) -> (i32, i32) {
    %c0_i32 = arith.constant 0 : i32
    %c0_i32_0 = arith.constant 0 : i32
    %c0_i32_1 = arith.constant 0 : i32
    return %c0_i32, %c0_i32_0 : i32, i32
  }
  func.func @transform_2(%arg0: i32) -> (i32, i32) {
    %c0_i32 = arith.constant 0 : i32
    %c0_i32_0 = arith.constant 0 : i32
    %c0_i32_1 = arith.constant 0 : i32
    return %c0_i32, %c0_i32_0 : i32, i32
  }
  func.func @transform_3(%arg0: i32) -> (i32, i32) {
    %c0_i32 = arith.constant 0 : i32
    %c0_i32_0 = arith.constant 0 : i32
    %c0_i32_1 = arith.constant 0 : i32
    return %c0_i32, %c0_i32_0 : i32, i32
  }
  func.func @transform_4(%arg0: i32) -> (i32, i32) {
    %c0_i32 = arith.constant 0 : i32
    %c0_i32_0 = arith.constant 0 : i32
    %c0_i32_1 = arith.constant 0 : i32
    return %c0_i32, %c0_i32_0 : i32, i32
  }
  func.func @transform_5(%arg0: i32) -> (i32, i32) {
    %c0_i32 = arith.constant 0 : i32
    %c0_i32_0 = arith.constant 0 : i32
    %c0_i32_1 = arith.constant 0 : i32
    return %c0_i32, %c0_i32_0 : i32, i32
  }
  func.func @transform_6(%arg0: i32) -> (i32, i32) {
    %c0_i32 = arith.constant 0 : i32
    %c0_i32_0 = arith.constant 0 : i32
    %c0_i32_1 = arith.constant 0 : i32
    return %c0_i32, %c0_i32_0 : i32, i32
  }
  func.func @transform_7(%arg0: i32) -> (i32, i32) {
    %c0_i32 = arith.constant 0 : i32
    %c0_i32_0 = arith.constant 0 : i32
    return %arg0, %c0_i32 : i32, i32
  }
}

module attributes {stable_mosaic.version = 11 : i64} {
  func.func @_encoder_kernel(%arg0: i32, %arg1: memref<32x128xf32, #tpu.memory_space<vmem>>, %arg2: memref<128x128xbf16, #tpu.memory_space<vmem>>, %arg3: memref<1x128xf32, #tpu.memory_space<vmem>>, %arg4: memref<128x128xbf16, #tpu.memory_space<vmem>>, %arg5: memref<1x128xf32, #tpu.memory_space<vmem>>, %arg6: memref<1x128xf32, #tpu.memory_space<vmem>>, %arg7: memref<1x128xf32, #tpu.memory_space<vmem>>, %arg8: memref<32x128xf32, #tpu.memory_space<vmem>>) attributes {dimension_semantics = [#tpu.dimension_semantics<parallel>], iteration_bounds = array<i64: 2>, scalar_prefetch = 0 : i64, scratch_operands = 0 : i64, tpu.core_type = #tpu.core_type<tc>, window_params = [{transform_indices = @transform_0, window_bounds = array<i64: 32, 128>}, {pipeline_mode = #tpu.pipeline_mode<synchronous>, transform_indices = @transform_1, window_bounds = array<i64: 128, 128>}, {pipeline_mode = #tpu.pipeline_mode<synchronous>, transform_indices = @transform_2, window_bounds = array<i64: 1, 128>}, {pipeline_mode = #tpu.pipeline_mode<synchronous>, transform_indices = @transform_3, window_bounds = array<i64: 128, 128>}, {pipeline_mode = #tpu.pipeline_mode<synchronous>, transform_indices = @transform_4, window_bounds = array<i64: 1, 128>}, {pipeline_mode = #tpu.pipeline_mode<synchronous>, transform_indices = @transform_5, window_bounds = array<i64: 1, 128>}, {pipeline_mode = #tpu.pipeline_mode<synchronous>, transform_indices = @transform_6, window_bounds = array<i64: 1, 128>}, {transform_indices = @transform_7, window_bounds = array<i64: 32, 128>}]} {
    %c0 = arith.constant 0 : index
    %c0_0 = arith.constant 0 : index
    %0 = vector.load %arg1[%c0, %c0_0] : memref<32x128xf32, #tpu.memory_space<vmem>>, vector<32x128xf32>
    %1 = arith.truncf %0 : vector<32x128xf32> to vector<32x128xbf16>
    %c0_1 = arith.constant 0 : index
    %c0_2 = arith.constant 0 : index
    %2 = vector.load %arg2[%c0_1, %c0_2] : memref<128x128xbf16, #tpu.memory_space<vmem>>, vector<128x128xbf16>
    %cst = arith.constant dense<0.000000e+00> : vector<32x128xf32>
    %3 = tpu.matmul %1, %2, %cst {dimension_numbers = #tpu.dot_dimension_numbers<[1], [0], [0], [1], [0, 0, 1, 1], [], []>} : vector<32x128xbf16>, vector<128x128xbf16>, vector<32x128xf32> -> vector<32x128xf32>
    %c0_3 = arith.constant 0 : index
    %c0_4 = arith.constant 0 : index
    %4 = vector.load %arg3[%c0_3, %c0_4] : memref<1x128xf32, #tpu.memory_space<vmem>>, vector<1x128xf32>
    %5 = vector.broadcast %4 : vector<1x128xf32> to vector<32x128xf32>
    %6 = arith.addf %3, %5 : vector<32x128xf32>
    %cst_5 = arith.constant 0.000000e+00 : f32
    %7 = vector.broadcast %cst_5 : f32 to vector<32x128xf32>
    %8 = arith.maximumf %6, %7 : vector<32x128xf32>
    %9 = arith.truncf %8 : vector<32x128xf32> to vector<32x128xbf16>
    %c0_6 = arith.constant 0 : index
    %c0_7 = arith.constant 0 : index
    %10 = vector.load %arg4[%c0_6, %c0_7] : memref<128x128xbf16, #tpu.memory_space<vmem>>, vector<128x128xbf16>
    %cst_8 = arith.constant dense<0.000000e+00> : vector<32x128xf32>
    %11 = tpu.matmul %9, %10, %cst_8 {dimension_numbers = #tpu.dot_dimension_numbers<[1], [0], [0], [1], [0, 0, 1, 1], [], []>} : vector<32x128xbf16>, vector<128x128xbf16>, vector<32x128xf32> -> vector<32x128xf32>
    %c0_9 = arith.constant 0 : index
    %c0_10 = arith.constant 0 : index
    %12 = vector.load %arg5[%c0_9, %c0_10] : memref<1x128xf32, #tpu.memory_space<vmem>>, vector<1x128xf32>
    %13 = vector.broadcast %12 : vector<1x128xf32> to vector<32x128xf32>
    %14 = arith.addf %11, %13 : vector<32x128xf32>
    %cst_11 = arith.constant dense<0.000000e+00> : vector<32xf32>
    %15 = vector.multi_reduction <add>, %14, %cst_11 [1] : vector<32x128xf32> to vector<32xf32>
    %16 = vector.shape_cast %15 : vector<32xf32> to vector<32x1xf32>
    %cst_12 = arith.constant 1.280000e+02 : f32
    %17 = vector.broadcast %cst_12 : f32 to vector<32x1xf32>
    %18 = arith.divf %16, %17 : vector<32x1xf32>
    %19 = vector.broadcast %18 : vector<32x1xf32> to vector<32x128xf32>
    %20 = arith.subf %14, %19 : vector<32x128xf32>
    %21 = arith.mulf %20, %20 : vector<32x128xf32>
    %cst_13 = arith.constant dense<0.000000e+00> : vector<32xf32>
    %22 = vector.multi_reduction <add>, %21, %cst_13 [1] : vector<32x128xf32> to vector<32xf32>
    %23 = vector.shape_cast %22 : vector<32xf32> to vector<32x1xf32>
    %cst_14 = arith.constant 1.280000e+02 : f32
    %24 = vector.broadcast %cst_14 : f32 to vector<32x1xf32>
    %25 = arith.divf %23, %24 : vector<32x1xf32>
    %c0_15 = arith.constant 0 : index
    %c0_16 = arith.constant 0 : index
    %26 = vector.load %arg6[%c0_15, %c0_16] : memref<1x128xf32, #tpu.memory_space<vmem>>, vector<1x128xf32>
    %cst_17 = arith.constant 9.99999974E-6 : f32
    %27 = vector.broadcast %cst_17 : f32 to vector<32x1xf32>
    %28 = arith.addf %25, %27 : vector<32x1xf32>
    %29 = math.rsqrt %28 : vector<32x1xf32>
    %30 = vector.broadcast %26 : vector<1x128xf32> to vector<32x128xf32>
    %31 = vector.broadcast %29 : vector<32x1xf32> to vector<32x128xf32>
    %32 = arith.mulf %30, %31 : vector<32x128xf32>
    %33 = arith.mulf %20, %32 : vector<32x128xf32>
    %c0_18 = arith.constant 0 : index
    %c0_19 = arith.constant 0 : index
    %34 = vector.load %arg7[%c0_18, %c0_19] : memref<1x128xf32, #tpu.memory_space<vmem>>, vector<1x128xf32>
    %35 = vector.broadcast %34 : vector<1x128xf32> to vector<32x128xf32>
    %36 = arith.addf %33, %35 : vector<32x128xf32>
    %c0_20 = arith.constant 0 : index
    %c0_21 = arith.constant 0 : index
    %37 = vector.load %arg8[%c0_20, %c0_21] : memref<32x128xf32, #tpu.memory_space<vmem>>, vector<32x128xf32>
    tpu.vector_store %arg8[%c0_20, %c0_21], %36 {strides = array<i32>} : memref<32x128xf32, #tpu.memory_space<vmem>>, vector<32x128xf32>,
    return
  }
  func.func @transform_0(%arg0: i32) -> (i32, i32) {
    %c0_i32 = arith.constant 0 : i32
    %c0_i32_0 = arith.constant 0 : i32
    return %arg0, %c0_i32 : i32, i32
  }
  func.func @transform_1(%arg0: i32) -> (i32, i32) {
    %c0_i32 = arith.constant 0 : i32
    %c0_i32_0 = arith.constant 0 : i32
    %c0_i32_1 = arith.constant 0 : i32
    return %c0_i32, %c0_i32_0 : i32, i32
  }
  func.func @transform_2(%arg0: i32) -> (i32, i32) {
    %c0_i32 = arith.constant 0 : i32
    %c0_i32_0 = arith.constant 0 : i32
    %c0_i32_1 = arith.constant 0 : i32
    return %c0_i32, %c0_i32_0 : i32, i32
  }
  func.func @transform_3(%arg0: i32) -> (i32, i32) {
    %c0_i32 = arith.constant 0 : i32
    %c0_i32_0 = arith.constant 0 : i32
    %c0_i32_1 = arith.constant 0 : i32
    return %c0_i32, %c0_i32_0 : i32, i32
  }
  func.func @transform_4(%arg0: i32) -> (i32, i32) {
    %c0_i32 = arith.constant 0 : i32
    %c0_i32_0 = arith.constant 0 : i32
    %c0_i32_1 = arith.constant 0 : i32
    return %c0_i32, %c0_i32_0 : i32, i32
  }
  func.func @transform_5(%arg0: i32) -> (i32, i32) {
    %c0_i32 = arith.constant 0 : i32
    %c0_i32_0 = arith.constant 0 : i32
    %c0_i32_1 = arith.constant 0 : i32
    return %c0_i32, %c0_i32_0 : i32, i32
  }
  func.func @transform_6(%arg0: i32) -> (i32, i32) {
    %c0_i32 = arith.constant 0 : i32
    %c0_i32_0 = arith.constant 0 : i32
    %c0_i32_1 = arith.constant 0 : i32
    return %c0_i32, %c0_i32_0 : i32, i32
  }
  func.func @transform_7(%arg0: i32) -> (i32, i32) {
    %c0_i32 = arith.constant 0 : i32
    %c0_i32_0 = arith.constant 0 : i32
    return %arg0, %c0_i32 : i32, i32
  }
}

</mosaic_0001>

<llo_original>
// kernel: tpu_custom_call.1
$region0: #{tpu_custom_call.1}
  #allocation0 [shape = 'u32[]', space=smem, size = 0x4, offset = 0x4, fixed_abs, tag = 'smem constant byte address 0x4 - core index']
  #allocation1 [shape = 'u32[144,128]{1,0:T(1,128)}', space=vmem, size = 0x12000, scoped, tag = 'internal scratch']
  %s0 = inlined_call_operand.hbm [shape: f32[64,128], index: 0, kind: input, shape index: {}]
  %s1 = inlined_call_operand.hbm [shape: bf16[128,128], index: 1, kind: input, shape index: {}]
  %s2 = inlined_call_operand.vmem [shape: f32[1,128], index: 2, kind: input, shape index: {}]
  %s3 = inlined_call_operand.hbm [shape: bf16[128,128], index: 3, kind: input, shape index: {}]
  %s4 = inlined_call_operand.vmem [shape: f32[1,128], index: 4, kind: input, shape index: {}]
  %s5 = inlined_call_operand.vmem [shape: f32[1,128], index: 5, kind: input, shape index: {}]
  %s6 = inlined_call_operand.vmem [shape: f32[1,128], index: 6, kind: input, shape index: {}]
  %s7 = inlined_call_operand.hbm [shape: f32[64,128], index: 7, kind: output, shape index: {}]
  %s8 = sld [smem:[#allocation0]]
  $region73: #{tpu_custom_call.1} parent=0
    _
  %s10 = ssub.s32 1, %s8
  %s11 = scalar_select 0, %s10, %s8
  $region1: #{tpu_custom_call.1} parent=0
    #allocation2 [shape = 'u8[32768]{0}', space=vmem, size = 0x8000, scoped, tag = 'input window, operand 0']
    #allocation3 [shape = 's32[2]{0}', space=sflag, size = 0x8, scoped, tag = 'scoped memory for tpu_custom_call.1']
    #allocation4 [shape = 's32[2]{0}', space=sflag, size = 0x8, scoped, tag = 'scoped memory for tpu_custom_call.1']
    #allocation5 [shape = 'u8[32768]{0}', space=vmem, size = 0x8000, scoped, tag = 'input window, operand 1, single buffered']
    #allocation6 [shape = 's32[1]{0}', space=sflag, size = 0x4, scoped, tag = 'scoped memory for tpu_custom_call.1']
    #allocation7 [shape = 'u8[32768]{0}', space=vmem, size = 0x8000, scoped, tag = 'input window, operand 3, single buffered']
    #allocation8 [shape = 'u8[32768]{0}', space=vmem, size = 0x8000, scoped, tag = 'output window, operand 0']
    %12 = vsyncpa [#allocation3], 0
    %s13 = scalar_lea.sflag [#allocation3], 1
    %14 = vsyncpa %s13, 0
    %15 = vsyncpa [#allocation6], 0
    %16 = vsyncpa [#allocation4], 0
    %s17 = scalar_lea.sflag [#allocation4], 1
    %18 = vsyncpa %s17, 0
    loop: start=0, step=1, limit=4
    $region2: #{tpu_custom_call.1} parent=1 // loop_pre_header
      _
    $region3: #{tpu_custom_call.1} parent=1 // loop_header
      %s20 = sphi 0, %s24
      %p21 = scmp.ge.s32.totalorder %s20, 4
      %s30 = sphi 0, %s32
      %s33 = sphi 0, %s30
      %s34 = sphi 0, %s33
      %s50 = sphi 0, %s34
      %s54 = sphi 0, %s54
      %s56 = sphi 0, %s54
      %s57 = sphi 0, %s56
      %s71 = sphi 0, %s57
      %s75 = sphi 0, %s75
      %s77 = sphi 0, %s75
      %s78 = sphi 0, %s77
      %s92 = sphi 0, %s78
      %s96 = sphi 0, %s96
      %s98 = sphi 0, %s96
      %s99 = sphi 0, %s98
      %s113 = sphi 0, %s99
      %s117 = sphi 0, %s117
      %s119 = sphi 0, %s117
      %s120 = sphi 0, %s119
      %s134 = sphi 0, %s120
      %s138 = sphi 0, %s138
      %s140 = sphi 0, %s138
      %s141 = sphi 0, %s140
      %s155 = sphi 0, %s141
      %s159 = sphi 0, %s159
      %s161 = sphi 0, %s159
      %s162 = sphi 0, %s161
      %s176 = sphi 0, %s162
      %s182 = sphi 0, %s184
      %s185 = sphi 0, %s182
      %s186 = sphi 0, %s185
      %s202 = sphi 0, %s186
    $region4: #{tpu_custom_call.1} parent=1 // loop_header_branch
      %23 = sbr.rel (%p21) target = $region8
    $region5: #{tpu_custom_call.1} parent=1 // loop_body
      %s25 = ssub.s32 %s20, 1
      %s26 = ssub.s32 %s20, 2
      %s27 = sadd.s32 %s20, 1
      %s28 = ssub.s32 %s20, %s27
      %p29 = scmp.eq.s32.totalorder %s28, 0
      %s31 = sadd.s32 %s30, 1
      %s32 = scalar_select %p29, %s30, %s31
      %p35 = pneg %p29
      %p36 = scmp.eq.s32.totalorder %s20, 1
      %p37 = por %p35, %p36
      %p38 = scmp.ne.s32.totalorder %s30, %s33
      %p39 = scmp.eq.s32.totalorder %s20, 0
      %p40 = por %p38, %p39
      %p41 = scmp.ne.s32.totalorder %s30, %s33
      %p42 = scmp.eq.s32.totalorder %s25, 1
      %p43 = por %p41, %p42
      %p44 = scmp.ne.s32.totalorder %s33, %s34
      %p45 = scmp.eq.s32.totalorder %s25, 0
      %p46 = por %p44, %p45
      %p47 = scmp.ne.s32.totalorder %s33, %s34
      %p48 = scmp.eq.s32.totalorder %s26, 1
      %p49 = por %p47, %p48
      %p51 = scmp.ne.s32.totalorder %s34, %s50
      %p52 = scmp.eq.s32.totalorder %s26, 0
      %p53 = por %p51, %p52
      %s55 = sadd.s32 %s54, 1
      %p58 = scmp.eq.s32.totalorder %s20, 1
      %p59 = scmp.ne.s32.totalorder %s54, %s56
      %p60 = scmp.eq.s32.totalorder %s20, 0
      %p61 = por %p59, %p60
      %p62 = scmp.ne.s32.totalorder %s54, %s56
      %p63 = scmp.eq.s32.totalorder %s25, 1
      %p64 = por %p62, %p63
      %p65 = scmp.ne.s32.totalorder %s56, %s57
      %p66 = scmp.eq.s32.totalorder %s25, 0
      %p67 = por %p65, %p66
      %p68 = scmp.ne.s32.totalorder %s56, %s57
      %p69 = scmp.eq.s32.totalorder %s26, 1
      %p70 = por %p68, %p69
      %p72 = scmp.ne.s32.totalorder %s57, %s71
      %p73 = scmp.eq.s32.totalorder %s26, 0
      %p74 = por %p72, %p73
      %s76 = sadd.s32 %s75, 1
      %p79 = scmp.eq.s32.totalorder %s20, 1
      %p80 = scmp.ne.s32.totalorder %s75, %s77
      %p81 = scmp.eq.s32.totalorder %s20, 0
      %p82 = por %p80, %p81
      %p83 = scmp.ne.s32.totalorder %s75, %s77
      %p84 = scmp.eq.s32.totalorder %s25, 1
      %p85 = por %p83, %p84
      %p86 = scmp.ne.s32.totalorder %s77, %s78
      %p87 = scmp.eq.s32.totalorder %s25, 0
      %p88 = por %p86, %p87
      %p89 = scmp.ne.s32.totalorder %s77, %s78
      %p90 = scmp.eq.s32.totalorder %s26, 1
      %p91 = por %p89, %p90
      %p93 = scmp.ne.s32.totalorder %s78, %s92
      %p94 = scmp.eq.s32.totalorder %s26, 0
      %p95 = por %p93, %p94
      %s97 = sadd.s32 %s96, 1
      %p100 = scmp.eq.s32.totalorder %s20, 1
      %p101 = scmp.ne.s32.totalorder %s96, %s98
      %p102 = scmp.eq.s32.totalorder %s20, 0
      %p103 = por %p101, %p102
      %p104 = scmp.ne.s32.totalorder %s96, %s98
      %p105 = scmp.eq.s32.totalorder %s25, 1
      %p106 = por %p104, %p105
      %p107 = scmp.ne.s32.totalorder %s98, %s99
      %p108 = scmp.eq.s32.totalorder %s25, 0
      %p109 = por %p107, %p108
      %p110 = scmp.ne.s32.totalorder %s98, %s99
      %p111 = scmp.eq.s32.totalorder %s26, 1
      %p112 = por %p110, %p111
      %p114 = scmp.ne.s32.totalorder %s99, %s113
      %p115 = scmp.eq.s32.totalorder %s26, 0
      %p116 = por %p114, %p115
      %s118 = sadd.s32 %s117, 1
      %p121 = scmp.eq.s32.totalorder %s20, 1
      %p122 = scmp.ne.s32.totalorder %s117, %s119
      %p123 = scmp.eq.s32.totalorder %s20, 0
      %p124 = por %p122, %p123
      %p125 = scmp.ne.s32.totalorder %s117, %s119
      %p126 = scmp.eq.s32.totalorder %s25, 1
      %p127 = por %p125, %p126
      %p128 = scmp.ne.s32.totalorder %s119, %s120
      %p129 = scmp.eq.s32.totalorder %s25, 0
      %p130 = por %p128, %p129
      %p131 = scmp.ne.s32.totalorder %s119, %s120
      %p132 = scmp.eq.s32.totalorder %s26, 1
      %p133 = por %p131, %p132
      %p135 = scmp.ne.s32.totalorder %s120, %s134
      %p136 = scmp.eq.s32.totalorder %s26, 0
      %p137 = por %p135, %p136
      %s139 = sadd.s32 %s138, 1
      %p142 = scmp.eq.s32.totalorder %s20, 1
      %p143 = scmp.ne.s32.totalorder %s138, %s140
      %p144 = scmp.eq.s32.totalorder %s20, 0
      %p145 = por %p143, %p144
      %p146 = scmp.ne.s32.totalorder %s138, %s140
      %p147 = scmp.eq.s32.totalorder %s25, 1
      %p148 = por %p146, %p147
      %p149 = scmp.ne.s32.totalorder %s140, %s141
      %p150 = scmp.eq.s32.totalorder %s25, 0
      %p151 = por %p149, %p150
      %p152 = scmp.ne.s32.totalorder %s140, %s141
      %p153 = scmp.eq.s32.totalorder %s26, 1
      %p154 = por %p152, %p153
      %p156 = scmp.ne.s32.totalorder %s141, %s155
      %p157 = scmp.eq.s32.totalorder %s26, 0
      %p158 = por %p156, %p157
      %s160 = sadd.s32 %s159, 1
      %p163 = scmp.eq.s32.totalorder %s20, 1
      %p164 = scmp.ne.s32.totalorder %s159, %s161
      %p165 = scmp.eq.s32.totalorder %s20, 0
      %p166 = por %p164, %p165
      %p167 = scmp.ne.s32.totalorder %s159, %s161
      %p168 = scmp.eq.s32.totalorder %s25, 1
      %p169 = por %p167, %p168
      %p170 = scmp.ne.s32.totalorder %s161, %s162
      %p171 = scmp.eq.s32.totalorder %s25, 0
      %p172 = por %p170, %p171
      %p173 = scmp.ne.s32.totalorder %s161, %s162
      %p174 = scmp.eq.s32.totalorder %s26, 1
      %p175 = por %p173, %p174
      %p177 = scmp.ne.s32.totalorder %s162, %s176
      %p178 = scmp.eq.s32.totalorder %s26, 0
      %p179 = por %p177, %p178
      %s180 = ssub.s32 %s20, %s27
      %p181 = scmp.eq.s32.totalorder %s180, 0
      %s183 = sadd.s32 %s182, 1
      %s184 = scalar_select %p181, %s182, %s183
      %p187 = pneg %p181
      %p188 = scmp.eq.s32.totalorder %s20, 1
      %p189 = por %p187, %p188
      %p190 = scmp.ne.s32.totalorder %s182, %s185
      %p191 = scmp.eq.s32.totalorder %s20, 0
      %p192 = por %p190, %p191
      %p193 = scmp.ne.s32.totalorder %s182, %s185
      %p194 = scmp.eq.s32.totalorder %s25, 1
      %p195 = por %p193, %p194
      %p196 = scmp.ne.s32.totalorder %s185, %s186
      %p197 = scmp.eq.s32.totalorder %s25, 0
      %p198 = por %p196, %p197
      %p199 = scmp.ne.s32.totalorder %s185, %s186
      %p200 = scmp.eq.s32.totalorder %s26, 1
      %p201 = por %p199, %p200
      %p203 = scmp.ne.s32.totalorder %s186, %s202
      %p204 = scmp.eq.s32.totalorder %s26, 0
      %p205 = por %p203, %p204
      %p206 = scmp.le.s32.totalorder 1, %s20
      %p207 = scmp.lt.s32.totalorder %s20, 3
      %p208 = pnand %p206, %p207
      %p209 = pneg %p208
      // Predicated region
      $region9: #{tpu_custom_call.1} parent=5 // pred_check
        _
      $region10: #{tpu_custom_call.1} parent=5 // pred_check_branch
        %211 = sbr.rel (%p208) target = $region12
      $region11: #{tpu_custom_call.1} parent=5 // pred_region
        %s212 = ssub.s32 %s20, 1
        // Predicated region
        $region13: #{tpu_custom_call.1} parent=11 // pred_check
          %p213 = pneg %p67
        $region14: #{tpu_custom_call.1} parent=11 // pred_check_branch
          %215 = sbr.rel (%p213) target = $region16
        $region15: #{tpu_custom_call.1} parent=11 // pred_region
          %s217 = ssub.s32 1024, 1024
          %218 = vsyncadd [#allocation6], %s217
          %s219 = sshll.u32 [#allocation5], 4
          %s220 = int_to_ptr.vmem [resolvable:$true] %s219
          %225 = dma.hbm_to_vmem [thread:$0]  %s1, 1024, %s220, [#allocation6], 64, 64, 4
        $region16: #{tpu_custom_call.1} parent=11 // pred_fallthru
          _
        // Predicated region
        $region17: #{tpu_custom_call.1} parent=11 // pred_check
          %p226 = pneg %p88
        $region18: #{tpu_custom_call.1} parent=11 // pred_check_branch
          %228 = sbr.rel (%p226) target = $region20
        $region19: #{tpu_custom_call.1} parent=11 // pred_region
          _
        $region20: #{tpu_custom_call.1} parent=11 // pred_fallthru
          _
        // Predicated region
        $region21: #{tpu_custom_call.1} parent=11 // pred_check
          %p229 = pneg %p109
        $region22: #{tpu_custom_call.1} parent=11 // pred_check_branch
          %231 = sbr.rel (%p229) target = $region24
        $region23: #{tpu_custom_call.1} parent=11 // pred_region
          %s233 = ssub.s32 1024, 1024
          %234 = vsyncadd [#allocation6], %s233
          %s235 = sshll.u32 [#allocation7], 4
          %s236 = int_to_ptr.vmem [resolvable:$true] %s235
          %241 = dma.hbm_to_vmem [thread:$0]  %s3, 1024, %s236, [#allocation6], 64, 64, 4
        $region24: #{tpu_custom_call.1} parent=11 // pred_fallthru
          _
        // Predicated region
        $region25: #{tpu_custom_call.1} parent=11 // pred_check
          %p242 = pneg %p130
        $region26: #{tpu_custom_call.1} parent=11 // pred_check_branch
          %244 = sbr.rel (%p242) target = $region28
        $region27: #{tpu_custom_call.1} parent=11 // pred_region
          _
        $region28: #{tpu_custom_call.1} parent=11 // pred_fallthru
          _
        // Predicated region
        $region29: #{tpu_custom_call.1} parent=11 // pred_check
          %p245 = pneg %p151
        $region30: #{tpu_custom_call.1} parent=11 // pred_check_branch
          %247 = sbr.rel (%p245) target = $region32
        $region31: #{tpu_custom_call.1} parent=11 // pred_region
          _
        $region32: #{tpu_custom_call.1} parent=11 // pred_fallthru
          _
        // Predicated region
        $region33: #{tpu_custom_call.1} parent=11 // pred_check
          %p248 = pneg %p172
        $region34: #{tpu_custom_call.1} parent=11 // pred_check_branch
          %250 = sbr.rel (%p248) target = $region36
        $region35: #{tpu_custom_call.1} parent=11 // pred_region
          _
        $region36: #{tpu_custom_call.1} parent=11 // pred_fallthru
          _
      $region12: #{tpu_custom_call.1} parent=5 // pred_fallthru
        _
      %p251 = scmp.lt.s32.totalorder %s20, 2
      // Predicated region
      $region37: #{tpu_custom_call.1} parent=5 // pred_check
        %p252 = pneg %p251
      $region38: #{tpu_custom_call.1} parent=5 // pred_check_branch
        %254 = sbr.rel (%p252) target = $region40
      $region39: #{tpu_custom_call.1} parent=5 // pred_region
        // Predicated region
        $region41: #{tpu_custom_call.1} parent=39 // pred_check
          %p255 = pneg %p40
        $region42: #{tpu_custom_call.1} parent=39 // pred_check_branch
          %257 = sbr.rel (%p255) target = $region44
        $region43: #{tpu_custom_call.1} parent=39 // pred_region
          %s258 = sand.u32 %s30, 1
          %s259 = scalar_lea.sflag [#allocation3], %s258
          %s260 = sand.u32 %s30, 1
          %s261 = smul.addr %s260, 32
          %s262 = scalar_lea.vmem [#allocation2], %s261
          %s263 = smul.u32 4, %s20
          %s265 = ssub.s32 512, 512
          %266 = vsyncadd %s259, %s265
          %s267 = smul.addr %s263, 128
          %s268 = scalar_lea.hbm %s0, %s267
          %s269 = sshll.u32 %s262, 4
          %s270 = int_to_ptr.vmem [resolvable:$true] %s269
          %275 = dma.hbm_to_vmem [thread:$0]  %s268, 512, %s270, %s259, 128, 128, 8
        $region44: #{tpu_custom_call.1} parent=39 // pred_fallthru
          _
      $region40: #{tpu_custom_call.1} parent=5 // pred_fallthru
        _
      %p276 = scmp.le.s32.totalorder 1, %s20
      %p277 = scmp.lt.s32.totalorder %s20, 3
      %p278 = pnand %p276, %p277
      %p279 = pneg %p278
      // Predicated region
      $region45: #{tpu_custom_call.1} parent=5 // pred_check
        _
      $region46: #{tpu_custom_call.1} parent=5 // pred_check_branch
        %281 = sbr.rel (%p278) target = $region48
      $region47: #{tpu_custom_call.1} parent=5 // pred_region
        %s282 = ssub.s32 %s20, 1
        %s283 = sand.u32 %s33, 1
        %s284 = scalar_lea.sflag [#allocation3], %s283
        %s285 = sand.u32 %s33, 1
        %s286 = smul.addr %s285, 32
        %s287 = scalar_lea.vmem [#allocation2], %s286
        // Predicated region
        $region49: #{tpu_custom_call.1} parent=47 // pred_check
          %p288 = pneg %p46
        $region50: #{tpu_custom_call.1} parent=47 // pred_check_branch
          %290 = sbr.rel (%p288) target = $region52
        $region51: #{tpu_custom_call.1} parent=47 // pred_region
          %291 = dma.done %s284, 512
        $region52: #{tpu_custom_call.1} parent=47 // pred_fallthru
          _
        // Predicated region
        $region53: #{tpu_custom_call.1} parent=47 // pred_check
          %p292 = pneg %p67
        $region54: #{tpu_custom_call.1} parent=47 // pred_check_branch
          %294 = sbr.rel (%p292) target = $region56
        $region55: #{tpu_custom_call.1} parent=47 // pred_region
          %295 = dma.done [#allocation6], 1024
        $region56: #{tpu_custom_call.1} parent=47 // pred_fallthru
          _
        // Predicated region
        $region57: #{tpu_custom_call.1} parent=47 // pred_check
          %p296 = pneg %p109
        $region58: #{tpu_custom_call.1} parent=47 // pred_check_branch
          %298 = sbr.rel (%p296) target = $region60
        $region59: #{tpu_custom_call.1} parent=47 // pred_region
          %299 = dma.done [#allocation6], 1024
        $region60: #{tpu_custom_call.1} parent=47 // pred_fallthru
          _
        %s300 = sand.u32 %s33, 1
        %s301 = scalar_lea.sflag [#allocation3], %s300
        %s302 = sand.u32 %s33, 1
        %s303 = smul.addr %s302, 32
        %s304 = scalar_lea.vmem [#allocation2], %s303
        %p305 = pneg %p46
        %p306 = pneg %p43
        %p307 = pneg %p67
        %p308 = pneg %p64
        %p309 = pneg %p88
        %p310 = pneg %p85
        %p311 = pneg %p109
        %p312 = pneg %p106
        %p313 = pneg %p130
        %p314 = pneg %p127
        %p315 = pneg %p151
        %p316 = pneg %p148
        %p317 = pneg %p172
        %p318 = pneg %p169
        %p319 = pneg %p198
        %p320 = pneg %p195
        %s321 = sand.u32 %s185, 1
        %s322 = scalar_lea.sflag [#allocation4], %s321
        %s323 = sand.u32 %s185, 1
        %s324 = smul.addr %s323, 32
        %s325 = scalar_lea.vmem [#allocation8], %s324
        %s326 = smul.u32 4, %s25
        %s327 = smul.u32 4, %s25
        %v329 = vld [vmem:[%s287] sm:$0xff]
        %v330 = vld [vmem:[%s287 + $0x8] sm:$0xff]
        %v331 = vld [vmem:[%s287 + $0x10] sm:$0xff]
        %v332 = vld [vmem:[%s287 + $0x18] sm:$0xff]
        %v333 = vpack.c.bf16 %v330, %v329
        %v334 = vpack.c.bf16 %v332, %v331
        %v335 = vld [vmem:[#allocation5] sm:$0xf]
        %v336 = vld [vmem:[#allocation5 + $0x4] sm:$0xf]
        %v337 = vld [vmem:[#allocation5 + $0x8] sm:$0xf]
        %v338 = vld [vmem:[#allocation5 + $0xc] sm:$0xf]
        %v339 = vld [vmem:[#allocation5 + $0x10] sm:$0xf]
        %v340 = vld [vmem:[#allocation5 + $0x14] sm:$0xf]
        %v341 = vld [vmem:[#allocation5 + $0x18] sm:$0xf]
        %v342 = vld [vmem:[#allocation5 + $0x1c] sm:$0xf]
        %v343 = vld [vmem:[#allocation5 + $0x20] sm:$0xf]
        %v344 = vld [vmem:[#allocation5 + $0x24] sm:$0xf]
        %v345 = vld [vmem:[#allocation5 + $0x28] sm:$0xf]
        %v346 = vld [vmem:[#allocation5 + $0x2c] sm:$0xf]
        %v347 = vld [vmem:[#allocation5 + $0x30] sm:$0xf]
        %v348 = vld [vmem:[#allocation5 + $0x34] sm:$0xf]
        %v349 = vld [vmem:[#allocation5 + $0x38] sm:$0xf]
        %v350 = vld [vmem:[#allocation5 + $0x3c] sm:$0xf]
        %v351 = vld [vmem:[%s2] sm:$0x1]
        %v353 = vlaneseq
        %v354 = vshrl.u32 %v353, 7
        %v355 = vsub.s32 0, %v354
        %v356 = vrot.slane %v351, %v355
        %v374 = vunpack.c.l.b16 %v335
        %v375 = vunpack.c.l.b16 %v336
        %v376 = vunpack.c.l.b16 %v337
        %v377 = vunpack.c.l.b16 %v338
        %v378 = vunpack.c.l.b16 %v339
        %v379 = vunpack.c.l.b16 %v340
        %v380 = vunpack.c.l.b16 %v341
        %v381 = vunpack.c.l.b16 %v342
        %v382 = vunpack.c.l.b16 %v343
        %v383 = vunpack.c.l.b16 %v344
        %v384 = vunpack.c.l.b16 %v345
        %v385 = vunpack.c.l.b16 %v346
        %v386 = vunpack.c.l.b16 %v347
        %v387 = vunpack.c.l.b16 %v348
        %v388 = vunpack.c.l.b16 %v349
        %v389 = vunpack.c.l.b16 %v350
        %v390 = vpack.c.b16 %v375, %v374
        %v391 = vpack.c.b16 %v377, %v376
        %v392 = vpack.c.b16 %v379, %v378
        %v393 = vpack.c.b16 %v381, %v380
        %v394 = vpack.c.b16 %v383, %v382
        %v395 = vpack.c.b16 %v385, %v384
        %v396 = vpack.c.b16 %v387, %v386
        %v397 = vpack.c.b16 %v389, %v388
        %406 = vmatprep.subr.bf16.mxu0 0
        %407 = vmatpush1.bf16.msra.mxu0 %v390
        %408 = vmatprep.subr.bf16.mxu0 0
        %409 = vmatpush1.bf16.msra.mxu0 %v391
        %410 = vmatprep.subr.bf16.mxu0 0
        %411 = vmatpush1.bf16.msra.mxu0 %v392
        %412 = vmatprep.subr.bf16.mxu0 0
        %413 = vmatpush1.bf16.msra.mxu0 %v393
        %414 = vmatprep.subr.bf16.mxu0 0
        %415 = vmatpush1.bf16.msra.mxu0 %v394
        %416 = vmatprep.subr.bf16.mxu0 0
        %417 = vmatpush1.bf16.msra.mxu0 %v395
        %418 = vmatprep.subr.bf16.mxu0 0
        %419 = vmatpush1.bf16.msra.mxu0 %v396
        %420 = vmatprep.subr.bf16.mxu0 0
        %421 = vmatpush1.bf16.msra.mxu0 %v397
        %422 = vmatprep.subr.bf16.mxu0 0
        %423 = vmatpush1.bf16.msra.mxu0 0
        %424 = vmatprep.subr.bf16.mxu0 0
        %425 = vmatpush1.bf16.msra.mxu0 0
        %426 = vmatprep.subr.bf16.mxu0 0
        %427 = vmatpush1.bf16.msra.mxu0 0
        %428 = vmatprep.subr.bf16.mxu0 0
        %429 = vmatpush1.bf16.msra.mxu0 0
        %430 = vmatprep.subr.bf16.mxu0 0
        %431 = vmatpush1.bf16.msra.mxu0 0
        %432 = vmatprep.subr.bf16.mxu0 0
        %433 = vmatpush1.bf16.msra.mxu0 0
        %434 = vmatprep.subr.bf16.mxu0 0
        %435 = vmatpush1.bf16.msra.mxu0 0
        %436 = vmatprep.subr.bf16.mxu0 0
        %437 = vmatpush1.bf16.msra.mxu0 0
        %438 = vmatprep.mubr.bf16.mxu0 0
        %439 = vmatmul.mubr.bf16.gmra.mrb[0].mxu0 %v333
        %v440 = vpop.f32.mrb[0].mxu0
        %v441 = vadd.f32 %v356, %v440
        %v442 = vpop.f32.mrb[0].mxu0
        %v443 = vpop.f32.mrb[0].mxu0
        %v444 = vadd.f32 %v356, %v443
        %v445 = vpop.f32.mrb[0].mxu0
        %446 = vmatprep.mubr.bf16.mxu0 0
        %447 = vmatmul.mubr.bf16.gmra.mrb[0].mxu0 %v334
        %v448 = vpop.f32.mrb[0].mxu0
        %v449 = vadd.f32 %v356, %v448
        %v450 = vpop.f32.mrb[0].mxu0
        %v451 = vpop.f32.mrb[0].mxu0
        %v452 = vadd.f32 %v356, %v451
        %v453 = vpop.f32.mrb[0].mxu0
        %454 = vdwg.mxu0
        %v455 = vmax.f32 %v441, 0.0
        %v456 = vmax.f32 %v444, 0.0
        %v457 = vmax.f32 %v449, 0.0
        %v458 = vmax.f32 %v452, 0.0
        %v459 = vpack.c.bf16 %v456, %v455
        %v460 = vpack.c.bf16 %v458, %v457
        %v461 = vld [vmem:[#allocation7] sm:$0xf]
        %v462 = vld [vmem:[#allocation7 + $0x4] sm:$0xf]
        %v463 = vld [vmem:[#allocation7 + $0x8] sm:$0xf]
        %v464 = vld [vmem:[#allocation7 + $0xc] sm:$0xf]
        %v465 = vld [vmem:[#allocation7 + $0x10] sm:$0xf]
        %v466 = vld [vmem:[#allocation7 + $0x14] sm:$0xf]
        %v467 = vld [vmem:[#allocation7 + $0x18] sm:$0xf]
        %v468 = vld [vmem:[#allocation7 + $0x1c] sm:$0xf]
        %v469 = vld [vmem:[#allocation7 + $0x20] sm:$0xf]
        %v470 = vld [vmem:[#allocation7 + $0x24] sm:$0xf]
        %v471 = vld [vmem:[#allocation7 + $0x28] sm:$0xf]
        %v472 = vld [vmem:[#allocation7 + $0x2c] sm:$0xf]
        %v473 = vld [vmem:[#allocation7 + $0x30] sm:$0xf]
        %v474 = vld [vmem:[#allocation7 + $0x34] sm:$0xf]
        %v475 = vld [vmem:[#allocation7 + $0x38] sm:$0xf]
        %v476 = vld [vmem:[#allocation7 + $0x3c] sm:$0xf]
        %v477 = vld [vmem:[%s4] sm:$0x1]
        %v479 = vlaneseq
        %v480 = vshrl.u32 %v479, 7
        %v481 = vsub.s32 0, %v480
        %v482 = vrot.slane %v477, %v481
        %v500 = vunpack.c.l.b16 %v461
        %v501 = vunpack.c.l.b16 %v462
        %v502 = vunpack.c.l.b16 %v463
        %v503 = vunpack.c.l.b16 %v464
        %v504 = vunpack.c.l.b16 %v465
        %v505 = vunpack.c.l.b16 %v466
        %v506 = vunpack.c.l.b16 %v467
        %v507 = vunpack.c.l.b16 %v468
        %v508 = vunpack.c.l.b16 %v469
        %v509 = vunpack.c.l.b16 %v470
        %v510 = vunpack.c.l.b16 %v471
        %v511 = vunpack.c.l.b16 %v472
        %v512 = vunpack.c.l.b16 %v473
        %v513 = vunpack.c.l.b16 %v474
        %v514 = vunpack.c.l.b16 %v475
        %v515 = vunpack.c.l.b16 %v476
        %v516 = vpack.c.b16 %v501, %v500
        %v517 = vpack.c.b16 %v503, %v502
        %v518 = vpack.c.b16 %v505, %v504
        %v519 = vpack.c.b16 %v507, %v506
        %v520 = vpack.c.b16 %v509, %v508
        %v521 = vpack.c.b16 %v511, %v510
        %v522 = vpack.c.b16 %v513, %v512
        %v523 = vpack.c.b16 %v515, %v514
        %532 = vmatprep.subr.bf16.mxu0 0
        %533 = vmatpush1.bf16.msra.mxu0 %v516
        %534 = vmatprep.subr.bf16.mxu0 0
        %535 = vmatpush1.bf16.msra.mxu0 %v517
        %536 = vmatprep.subr.bf16.mxu0 0
        %537 = vmatpush1.bf16.msra.mxu0 %v518
        %538 = vmatprep.subr.bf16.mxu0 0
        %539 = vmatpush1.bf16.msra.mxu0 %v519
        %540 = vmatprep.subr.bf16.mxu0 0
        %541 = vmatpush1.bf16.msra.mxu0 %v520
        %542 = vmatprep.subr.bf16.mxu0 0
        %543 = vmatpush1.bf16.msra.mxu0 %v521
        %544 = vmatprep.subr.bf16.mxu0 0
        %545 = vmatpush1.bf16.msra.mxu0 %v522
        %546 = vmatprep.subr.bf16.mxu0 0
        %547 = vmatpush1.bf16.msra.mxu0 %v523
        %548 = vmatprep.subr.bf16.mxu0 0
        %549 = vmatpush1.bf16.msra.mxu0 0
        %550 = vmatprep.subr.bf16.mxu0 0
        %551 = vmatpush1.bf16.msra.mxu0 0
        %552 = vmatprep.subr.bf16.mxu0 0
        %553 = vmatpush1.bf16.msra.mxu0 0
        %554 = vmatprep.subr.bf16.mxu0 0
        %555 = vmatpush1.bf16.msra.mxu0 0
        %556 = vmatprep.subr.bf16.mxu0 0
        %557 = vmatpush1.bf16.msra.mxu0 0
        %558 = vmatprep.subr.bf16.mxu0 0
        %559 = vmatpush1.bf16.msra.mxu0 0
        %560 = vmatprep.subr.bf16.mxu0 0
        %561 = vmatpush1.bf16.msra.mxu0 0
        %562 = vmatprep.subr.bf16.mxu0 0
        %563 = vmatpush1.bf16.msra.mxu0 0
        %564 = vmatprep.mubr.bf16.mxu0 0
        %565 = vmatmul.mubr.bf16.gmra.mrb[0].mxu0 %v459
        %v566 = vpop.f32.mrb[0].mxu0
        %v567 = vadd.f32 %v482, %v566
        %v568 = vpop.f32.mrb[0].mxu0
        %v569 = vpop.f32.mrb[0].mxu0
        %v570 = vadd.f32 %v482, %v569
        %v571 = vpop.f32.mrb[0].mxu0
        %572 = vmatprep.mubr.bf16.mxu0 0
        %573 = vmatmul.mubr.bf16.gmra.mrb[0].mxu0 %v460
        %v574 = vpop.f32.mrb[0].mxu0
        %v575 = vadd.f32 %v482, %v574
        %v576 = vpop.f32.mrb[0].mxu0
        %v577 = vpop.f32.mrb[0].mxu0
        %v578 = vadd.f32 %v482, %v577
        %v579 = vpop.f32.mrb[0].mxu0
        %580 = vdwg.mxu0
        %581 = vadd.xlane.f32.xlu0 %v567
        %v582 = vpop.xlane.xlu0 %581
        %583 = vadd.xlane.f32.xlu0 %v570
        %v584 = vpop.xlane.xlu0 %583
        %585 = vadd.xlane.f32.xlu0 %v575
        %v586 = vpop.xlane.xlu0 %585
        %587 = vadd.xlane.f32.xlu0 %v578
        %v588 = vpop.xlane.xlu0 %587
        %v589 = vrcp.pop 128.0
        %v590 = vmul.f32 %v582, %v589
        %v591 = vmul.f32 %v584, %v589
        %v592 = vmul.f32 %v586, %v589
        %v593 = vmul.f32 %v588, %v589
        %v594 = vsub.f32 %v567, %v590
        %v595 = vsub.f32 %v570, %v591
        %v596 = vsub.f32 %v575, %v592
        %v597 = vsub.f32 %v578, %v593
        %v598 = vmul.f32 %v594, %v594
        %v599 = vmul.f32 %v595, %v595
        %v600 = vmul.f32 %v596, %v596
        %v601 = vmul.f32 %v597, %v597
        %602 = vadd.xlane.f32.xlu0 %v598
        %v603 = vpop.xlane.xlu0 %602
        %604 = vadd.xlane.f32.xlu0 %v599
        %v605 = vpop.xlane.xlu0 %604
        %606 = vadd.xlane.f32.xlu0 %v600
        %v607 = vpop.xlane.xlu0 %606
        %608 = vadd.xlane.f32.xlu0 %v601
        %v609 = vpop.xlane.xlu0 %608
        %v610 = vmul.f32 %v603, %v589
        %v611 = vmul.f32 %v605, %v589
        %v612 = vmul.f32 %v607, %v589
        %v613 = vmul.f32 %v609, %v589
        %v614 = vld [vmem:[%s5] sm:$0x1]
        %v615 = vadd.f32 %v610, 1e-05
        %v616 = vadd.f32 %v611, 1e-05
        %v617 = vadd.f32 %v612, 1e-05
        %v618 = vadd.f32 %v613, 1e-05
        %v619 = vrsqrt.pop %v615
        %v620 = vrsqrt.pop %v616
        %v621 = vrsqrt.pop %v617
        %v622 = vrsqrt.pop %v618
        %v624 = vlaneseq
        %v625 = vshrl.u32 %v624, 7
        %v626 = vsub.s32 0, %v625
        %v627 = vrot.slane %v614, %v626
        %v629 = vmul.f32 %v627, %v619
        %v630 = vmul.f32 %v627, %v620
        %v631 = vmul.f32 %v627, %v621
        %v632 = vmul.f32 %v627, %v622
        %v633 = vmul.f32 %v594, %v629
        %v634 = vmul.f32 %v595, %v630
        %v635 = vmul.f32 %v596, %v631
        %v636 = vmul.f32 %v597, %v632
        %v637 = vld [vmem:[%s6] sm:$0x1]
        %v639 = vlaneseq
        %v640 = vshrl.u32 %v639, 7
        %v641 = vsub.s32 0, %v640
        %v642 = vrot.slane %v637, %v641
        %v644 = vadd.f32 %v633, %v642
        %v645 = vadd.f32 %v634, %v642
        %v646 = vadd.f32 %v635, %v642
        %v647 = vadd.f32 %v636, %v642
        %648 = vst [vmem:[%s325] sm:$0xff] %v644
        %649 = vst [vmem:[%s325 + $0x8] sm:$0xff] %v645
        %650 = vst [vmem:[%s325 + $0x10] sm:$0xff] %v646
        %651 = vst [vmem:[%s325 + $0x18] sm:$0xff] %v647
        %s652 = sand.u32 %s185, 1
        %s653 = scalar_lea.sflag [#allocation4], %s652
        %s654 = sand.u32 %s185, 1
        %s655 = smul.addr %s654, 32
        %s656 = scalar_lea.vmem [#allocation8], %s655
        // Predicated region
        $region61: #{tpu_custom_call.1} parent=47 // pred_check
          %p657 = pneg %p195
        $region62: #{tpu_custom_call.1} parent=47 // pred_check_branch
          %659 = sbr.rel (%p657) target = $region64
        $region63: #{tpu_custom_call.1} parent=47 // pred_region
          %s660 = smul.u32 4, %s25
          %s662 = ssub.s32 512, 512
          %663 = vsyncadd %s653, %s662
          %s664 = smul.addr %s660, 128
          %s665 = scalar_lea.hbm %s7, %s664
          %s666 = sshll.u32 %s656, 4
          %s667 = int_to_ptr.vmem [resolvable:$true] %s666
          %672 = dma.vmem_to_hbm [thread:$0]  %s667, 512, %s665, %s653, 128, 128, 8
        $region64: #{tpu_custom_call.1} parent=47 // pred_fallthru
          _
      $region48: #{tpu_custom_call.1} parent=5 // pred_fallthru
        _
      %p673 = scmp.le.s32.totalorder 2, %s20
      // Predicated region
      $region65: #{tpu_custom_call.1} parent=5 // pred_check
        %p674 = pneg %p673
      $region66: #{tpu_custom_call.1} parent=5 // pred_check_branch
        %676 = sbr.rel (%p674) target = $region68
      $region67: #{tpu_custom_call.1} parent=5 // pred_region
        %s677 = ssub.s32 %s20, 2
        // Predicated region
        $region69: #{tpu_custom_call.1} parent=67 // pred_check
          %p678 = pneg %p201
        $region70: #{tpu_custom_call.1} parent=67 // pred_check_branch
          %680 = sbr.rel (%p678) target = $region72
        $region71: #{tpu_custom_call.1} parent=67 // pred_region
          %s681 = sand.u32 %s186, 1
          %s682 = scalar_lea.sflag [#allocation4], %s681
          %s683 = sand.u32 %s186, 1
          %s684 = smul.addr %s683, 32
          %s685 = scalar_lea.vmem [#allocation8], %s684
          %686 = dma.done %s682, 512
        $region72: #{tpu_custom_call.1} parent=67 // pred_fallthru
          _
      $region68: #{tpu_custom_call.1} parent=5 // pred_fallthru
        _
    $region6: #{tpu_custom_call.1} parent=1 // loop_footer
      %s24 = sadd.s32 1, %s20
    $region7: #{tpu_custom_call.1} parent=1 // loop_footer_branch
      %19 = sbr.rel target = $region3
    $region8: #{tpu_custom_call.1} parent=1 // loop_exit
      _
    %687 = vsyncpa [#allocation3], 1
    %s688 = scalar_lea.sflag [#allocation3], 1
    %689 = vsyncpa %s688, 1
    %690 = vsyncpa [#allocation6], 1
    %691 = vsyncpa [#allocation4], 1
    %s692 = scalar_lea.sflag [#allocation4], 1
    %693 = vsyncpa %s692, 1

// kernel: tpu_custom_call.1
$region0: #{tpu_custom_call.1}
  #allocation0 [shape = 'u32[]', space=smem, size = 0x4, offset = 0x4, fixed_abs, tag = 'smem constant byte address 0x4 - core index']
  #allocation1 [shape = 'u32[144,128]{1,0:T(1,128)}', space=vmem, size = 0x12000, scoped, tag = 'internal scratch']
  %s0 = inlined_call_operand.hbm [shape: f32[64,128], index: 0, kind: input, shape index: {}]
  %s1 = inlined_call_operand.hbm [shape: bf16[128,128], index: 1, kind: input, shape index: {}]
  %s2 = inlined_call_operand.vmem [shape: f32[1,128], index: 2, kind: input, shape index: {}]
  %s3 = inlined_call_operand.hbm [shape: bf16[128,128], index: 3, kind: input, shape index: {}]
  %s4 = inlined_call_operand.vmem [shape: f32[1,128], index: 4, kind: input, shape index: {}]
  %s5 = inlined_call_operand.vmem [shape: f32[1,128], index: 5, kind: input, shape index: {}]
  %s6 = inlined_call_operand.vmem [shape: f32[1,128], index: 6, kind: input, shape index: {}]
  %s7 = inlined_call_operand.hbm [shape: f32[64,128], index: 7, kind: output, shape index: {}]
  %s8 = sld [smem:[#allocation0]]
  $region73: #{tpu_custom_call.1} parent=0
    _
  %s10 = ssub.s32 1, %s8
  %s11 = scalar_select 0, %s10, %s8
  $region1: #{tpu_custom_call.1} parent=0
    #allocation2 [shape = 'u8[32768]{0}', space=vmem, size = 0x8000, scoped, tag = 'input window, operand 0']
    #allocation3 [shape = 's32[2]{0}', space=sflag, size = 0x8, scoped, tag = 'scoped memory for tpu_custom_call.1']
    #allocation4 [shape = 's32[2]{0}', space=sflag, size = 0x8, scoped, tag = 'scoped memory for tpu_custom_call.1']
    #allocation5 [shape = 'u8[32768]{0}', space=vmem, size = 0x8000, scoped, tag = 'input window, operand 1, single buffered']
    #allocation6 [shape = 's32[1]{0}', space=sflag, size = 0x4, scoped, tag = 'scoped memory for tpu_custom_call.1']
    #allocation7 [shape = 'u8[32768]{0}', space=vmem, size = 0x8000, scoped, tag = 'input window, operand 3, single buffered']
    #allocation8 [shape = 'u8[32768]{0}', space=vmem, size = 0x8000, scoped, tag = 'output window, operand 0']
    %12 = vsyncpa [#allocation3], 0
    %s13 = scalar_lea.sflag [#allocation3], 1
    %14 = vsyncpa %s13, 0
    %15 = vsyncpa [#allocation6], 0
    %16 = vsyncpa [#allocation4], 0
    %s17 = scalar_lea.sflag [#allocation4], 1
    %18 = vsyncpa %s17, 0
    loop: start=0, step=1, limit=4
    $region2: #{tpu_custom_call.1} parent=1 // loop_pre_header
      _
    $region3: #{tpu_custom_call.1} parent=1 // loop_header
      %s20 = sphi 0, %s24
      %p21 = scmp.ge.s32.totalorder %s20, 4
      %s30 = sphi 0, %s32
      %s33 = sphi 0, %s30
      %s34 = sphi 0, %s33
      %s50 = sphi 0, %s34
      %s54 = sphi 0, %s54
      %s56 = sphi 0, %s54
      %s57 = sphi 0, %s56
      %s71 = sphi 0, %s57
      %s75 = sphi 0, %s75
      %s77 = sphi 0, %s75
      %s78 = sphi 0, %s77
      %s92 = sphi 0, %s78
      %s96 = sphi 0, %s96
      %s98 = sphi 0, %s96
      %s99 = sphi 0, %s98
      %s113 = sphi 0, %s99
      %s117 = sphi 0, %s117
      %s119 = sphi 0, %s117
      %s120 = sphi 0, %s119
      %s134 = sphi 0, %s120
      %s138 = sphi 0, %s138
      %s140 = sphi 0, %s138
      %s141 = sphi 0, %s140
      %s155 = sphi 0, %s141
      %s159 = sphi 0, %s159
      %s161 = sphi 0, %s159
      %s162 = sphi 0, %s161
      %s176 = sphi 0, %s162
      %s182 = sphi 0, %s184
      %s185 = sphi 0, %s182
      %s186 = sphi 0, %s185
      %s202 = sphi 0, %s186
    $region4: #{tpu_custom_call.1} parent=1 // loop_header_branch
      %23 = sbr.rel (%p21) target = $region8
    $region5: #{tpu_custom_call.1} parent=1 // loop_body
      %s25 = ssub.s32 %s20, 1
      %s26 = ssub.s32 %s20, 2
      %s27 = sadd.s32 %s20, 1
      %s28 = ssub.s32 %s20, %s27
      %p29 = scmp.eq.s32.totalorder %s28, 0
      %s31 = sadd.s32 %s30, 1
      %s32 = scalar_select %p29, %s30, %s31
      %p35 = pneg %p29
      %p36 = scmp.eq.s32.totalorder %s20, 1
      %p37 = por %p35, %p36
      %p38 = scmp.ne.s32.totalorder %s30, %s33
      %p39 = scmp.eq.s32.totalorder %s20, 0
      %p40 = por %p38, %p39
      %p41 = scmp.ne.s32.totalorder %s30, %s33
      %p42 = scmp.eq.s32.totalorder %s25, 1
      %p43 = por %p41, %p42
      %p44 = scmp.ne.s32.totalorder %s33, %s34
      %p45 = scmp.eq.s32.totalorder %s25, 0
      %p46 = por %p44, %p45
      %p47 = scmp.ne.s32.totalorder %s33, %s34
      %p48 = scmp.eq.s32.totalorder %s26, 1
      %p49 = por %p47, %p48
      %p51 = scmp.ne.s32.totalorder %s34, %s50
      %p52 = scmp.eq.s32.totalorder %s26, 0
      %p53 = por %p51, %p52
      %s55 = sadd.s32 %s54, 1
      %p58 = scmp.eq.s32.totalorder %s20, 1
      %p59 = scmp.ne.s32.totalorder %s54, %s56
      %p60 = scmp.eq.s32.totalorder %s20, 0
      %p61 = por %p59, %p60
      %p62 = scmp.ne.s32.totalorder %s54, %s56
      %p63 = scmp.eq.s32.totalorder %s25, 1
      %p64 = por %p62, %p63
      %p65 = scmp.ne.s32.totalorder %s56, %s57
      %p66 = scmp.eq.s32.totalorder %s25, 0
      %p67 = por %p65, %p66
      %p68 = scmp.ne.s32.totalorder %s56, %s57
      %p69 = scmp.eq.s32.totalorder %s26, 1
      %p70 = por %p68, %p69
      %p72 = scmp.ne.s32.totalorder %s57, %s71
      %p73 = scmp.eq.s32.totalorder %s26, 0
      %p74 = por %p72, %p73
      %s76 = sadd.s32 %s75, 1
      %p79 = scmp.eq.s32.totalorder %s20, 1
      %p80 = scmp.ne.s32.totalorder %s75, %s77
      %p81 = scmp.eq.s32.totalorder %s20, 0
      %p82 = por %p80, %p81
      %p83 = scmp.ne.s32.totalorder %s75, %s77
      %p84 = scmp.eq.s32.totalorder %s25, 1
      %p85 = por %p83, %p84
      %p86 = scmp.ne.s32.totalorder %s77, %s78
      %p87 = scmp.eq.s32.totalorder %s25, 0
      %p88 = por %p86, %p87
      %p89 = scmp.ne.s32.totalorder %s77, %s78
      %p90 = scmp.eq.s32.totalorder %s26, 1
      %p91 = por %p89, %p90
      %p93 = scmp.ne.s32.totalorder %s78, %s92
      %p94 = scmp.eq.s32.totalorder %s26, 0
      %p95 = por %p93, %p94
      %s97 = sadd.s32 %s96, 1
      %p100 = scmp.eq.s32.totalorder %s20, 1
      %p101 = scmp.ne.s32.totalorder %s96, %s98
      %p102 = scmp.eq.s32.totalorder %s20, 0
      %p103 = por %p101, %p102
      %p104 = scmp.ne.s32.totalorder %s96, %s98
      %p105 = scmp.eq.s32.totalorder %s25, 1
      %p106 = por %p104, %p105
      %p107 = scmp.ne.s32.totalorder %s98, %s99
      %p108 = scmp.eq.s32.totalorder %s25, 0
      %p109 = por %p107, %p108
      %p110 = scmp.ne.s32.totalorder %s98, %s99
      %p111 = scmp.eq.s32.totalorder %s26, 1
      %p112 = por %p110, %p111
      %p114 = scmp.ne.s32.totalorder %s99, %s113
      %p115 = scmp.eq.s32.totalorder %s26, 0
      %p116 = por %p114, %p115
      %s118 = sadd.s32 %s117, 1
      %p121 = scmp.eq.s32.totalorder %s20, 1
      %p122 = scmp.ne.s32.totalorder %s117, %s119
      %p123 = scmp.eq.s32.totalorder %s20, 0
      %p124 = por %p122, %p123
      %p125 = scmp.ne.s32.totalorder %s117, %s119
      %p126 = scmp.eq.s32.totalorder %s25, 1
      %p127 = por %p125, %p126
      %p128 = scmp.ne.s32.totalorder %s119, %s120
      %p129 = scmp.eq.s32.totalorder %s25, 0
      %p130 = por %p128, %p129
      %p131 = scmp.ne.s32.totalorder %s119, %s120
      %p132 = scmp.eq.s32.totalorder %s26, 1
      %p133 = por %p131, %p132
      %p135 = scmp.ne.s32.totalorder %s120, %s134
      %p136 = scmp.eq.s32.totalorder %s26, 0
      %p137 = por %p135, %p136
      %s139 = sadd.s32 %s138, 1
      %p142 = scmp.eq.s32.totalorder %s20, 1
      %p143 = scmp.ne.s32.totalorder %s138, %s140
      %p144 = scmp.eq.s32.totalorder %s20, 0
      %p145 = por %p143, %p144
      %p146 = scmp.ne.s32.totalorder %s138, %s140
      %p147 = scmp.eq.s32.totalorder %s25, 1
      %p148 = por %p146, %p147
      %p149 = scmp.ne.s32.totalorder %s140, %s141
      %p150 = scmp.eq.s32.totalorder %s25, 0
      %p151 = por %p149, %p150
      %p152 = scmp.ne.s32.totalorder %s140, %s141
      %p153 = scmp.eq.s32.totalorder %s26, 1
      %p154 = por %p152, %p153
      %p156 = scmp.ne.s32.totalorder %s141, %s155
      %p157 = scmp.eq.s32.totalorder %s26, 0
      %p158 = por %p156, %p157
      %s160 = sadd.s32 %s159, 1
      %p163 = scmp.eq.s32.totalorder %s20, 1
      %p164 = scmp.ne.s32.totalorder %s159, %s161
      %p165 = scmp.eq.s32.totalorder %s20, 0
      %p166 = por %p164, %p165
      %p167 = scmp.ne.s32.totalorder %s159, %s161
      %p168 = scmp.eq.s32.totalorder %s25, 1
      %p169 = por %p167, %p168
      %p170 = scmp.ne.s32.totalorder %s161, %s162
      %p171 = scmp.eq.s32.totalorder %s25, 0
      %p172 = por %p170, %p171
      %p173 = scmp.ne.s32.totalorder %s161, %s162
      %p174 = scmp.eq.s32.totalorder %s26, 1
      %p175 = por %p173, %p174
      %p177 = scmp.ne.s32.totalorder %s162, %s176
      %p178 = scmp.eq.s32.totalorder %s26, 0
      %p179 = por %p177, %p178
      %s180 = ssub.s32 %s20, %s27
      %p181 = scmp.eq.s32.totalorder %s180, 0
      %s183 = sadd.s32 %s182, 1
      %s184 = scalar_select %p181, %s182, %s183
      %p187 = pneg %p181
      %p188 = scmp.eq.s32.totalorder %s20, 1
      %p189 = por %p187, %p188
      %p190 = scmp.ne.s32.totalorder %s182, %s185
      %p191 = scmp.eq.s32.totalorder %s20, 0
      %p192 = por %p190, %p191
      %p193 = scmp.ne.s32.totalorder %s182, %s185
      %p194 = scmp.eq.s32.totalorder %s25, 1
      %p195 = por %p193, %p194
      %p196 = scmp.ne.s32.totalorder %s185, %s186
      %p197 = scmp.eq.s32.totalorder %s25, 0
      %p198 = por %p196, %p197
      %p199 = scmp.ne.s32.totalorder %s185, %s186
      %p200 = scmp.eq.s32.totalorder %s26, 1
      %p201 = por %p199, %p200
      %p203 = scmp.ne.s32.totalorder %s186, %s202
      %p204 = scmp.eq.s32.totalorder %s26, 0
      %p205 = por %p203, %p204
      %p206 = scmp.le.s32.totalorder 1, %s20
      %p207 = scmp.lt.s32.totalorder %s20, 3
      %p208 = pnand %p206, %p207
      %p209 = pneg %p208
      // Predicated region
      $region9: #{tpu_custom_call.1} parent=5 // pred_check
        _
      $region10: #{tpu_custom_call.1} parent=5 // pred_check_branch
        %211 = sbr.rel (%p208) target = $region12
      $region11: #{tpu_custom_call.1} parent=5 // pred_region
        %s212 = ssub.s32 %s20, 1
        // Predicated region
        $region13: #{tpu_custom_call.1} parent=11 // pred_check
          %p213 = pneg %p67
        $region14: #{tpu_custom_call.1} parent=11 // pred_check_branch
          %215 = sbr.rel (%p213) target = $region16
        $region15: #{tpu_custom_call.1} parent=11 // pred_region
          %s217 = ssub.s32 1024, 1024
          %218 = vsyncadd [#allocation6], %s217
          %s219 = sshll.u32 [#allocation5], 4
          %s220 = int_to_ptr.vmem [resolvable:$true] %s219
          %225 = dma.hbm_to_vmem [thread:$0]  %s1, 1024, %s220, [#allocation6], 64, 64, 4
        $region16: #{tpu_custom_call.1} parent=11 // pred_fallthru
          _
        // Predicated region
        $region17: #{tpu_custom_call.1} parent=11 // pred_check
          %p226 = pneg %p88
        $region18: #{tpu_custom_call.1} parent=11 // pred_check_branch
          %228 = sbr.rel (%p226) target = $region20
        $region19: #{tpu_custom_call.1} parent=11 // pred_region
          _
        $region20: #{tpu_custom_call.1} parent=11 // pred_fallthru
          _
        // Predicated region
        $region21: #{tpu_custom_call.1} parent=11 // pred_check
          %p229 = pneg %p109
        $region22: #{tpu_custom_call.1} parent=11 // pred_check_branch
          %231 = sbr.rel (%p229) target = $region24
        $region23: #{tpu_custom_call.1} parent=11 // pred_region
          %s233 = ssub.s32 1024, 1024
          %234 = vsyncadd [#allocation6], %s233
          %s235 = sshll.u32 [#allocation7], 4
          %s236 = int_to_ptr.vmem [resolvable:$true] %s235
          %241 = dma.hbm_to_vmem [thread:$0]  %s3, 1024, %s236, [#allocation6], 64, 64, 4
        $region24: #{tpu_custom_call.1} parent=11 // pred_fallthru
          _
        // Predicated region
        $region25: #{tpu_custom_call.1} parent=11 // pred_check
          %p242 = pneg %p130
        $region26: #{tpu_custom_call.1} parent=11 // pred_check_branch
          %244 = sbr.rel (%p242) target = $region28
        $region27: #{tpu_custom_call.1} parent=11 // pred_region
          _
        $region28: #{tpu_custom_call.1} parent=11 // pred_fallthru
          _
        // Predicated region
        $region29: #{tpu_custom_call.1} parent=11 // pred_check
          %p245 = pneg %p151
        $region30: #{tpu_custom_call.1} parent=11 // pred_check_branch
          %247 = sbr.rel (%p245) target = $region32
        $region31: #{tpu_custom_call.1} parent=11 // pred_region
          _
        $region32: #{tpu_custom_call.1} parent=11 // pred_fallthru
          _
        // Predicated region
        $region33: #{tpu_custom_call.1} parent=11 // pred_check
          %p248 = pneg %p172
        $region34: #{tpu_custom_call.1} parent=11 // pred_check_branch
          %250 = sbr.rel (%p248) target = $region36
        $region35: #{tpu_custom_call.1} parent=11 // pred_region
          _
        $region36: #{tpu_custom_call.1} parent=11 // pred_fallthru
          _
      $region12: #{tpu_custom_call.1} parent=5 // pred_fallthru
        _
      %p251 = scmp.lt.s32.totalorder %s20, 2
      // Predicated region
      $region37: #{tpu_custom_call.1} parent=5 // pred_check
        %p252 = pneg %p251
      $region38: #{tpu_custom_call.1} parent=5 // pred_check_branch
        %254 = sbr.rel (%p252) target = $region40
      $region39: #{tpu_custom_call.1} parent=5 // pred_region
        // Predicated region
        $region41: #{tpu_custom_call.1} parent=39 // pred_check
          %p255 = pneg %p40
        $region42: #{tpu_custom_call.1} parent=39 // pred_check_branch
          %257 = sbr.rel (%p255) target = $region44
        $region43: #{tpu_custom_call.1} parent=39 // pred_region
          %s258 = sand.u32 %s30, 1
          %s259 = scalar_lea.sflag [#allocation3], %s258
          %s260 = sand.u32 %s30, 1
          %s261 = smul.addr %s260, 32
          %s262 = scalar_lea.vmem [#allocation2], %s261
          %s263 = smul.u32 4, %s20
          %s265 = ssub.s32 512, 512
          %266 = vsyncadd %s259, %s265
          %s267 = smul.addr %s263, 128
          %s268 = scalar_lea.hbm %s0, %s267
          %s269 = sshll.u32 %s262, 4
          %s270 = int_to_ptr.vmem [resolvable:$true] %s269
          %275 = dma.hbm_to_vmem [thread:$0]  %s268, 512, %s270, %s259, 128, 128, 8
        $region44: #{tpu_custom_call.1} parent=39 // pred_fallthru
          _
      $region40: #{tpu_custom_call.1} parent=5 // pred_fallthru
        _
      %p276 = scmp.le.s32.totalorder 1, %s20
      %p277 = scmp.lt.s32.totalorder %s20, 3
      %p278 = pnand %p276, %p277
      %p279 = pneg %p278
      // Predicated region
      $region45: #{tpu_custom_call.1} parent=5 // pred_check
        _
      $region46: #{tpu_custom_call.1} parent=5 // pred_check_branch
        %281 = sbr.rel (%p278) target = $region48
      $region47: #{tpu_custom_call.1} parent=5 // pred_region
        %s282 = ssub.s32 %s20, 1
        %s283 = sand.u32 %s33, 1
        %s284 = scalar_lea.sflag [#allocation3], %s283
        %s285 = sand.u32 %s33, 1
        %s286 = smul.addr %s285, 32
        %s287 = scalar_lea.vmem [#allocation2], %s286
        // Predicated region
        $region49: #{tpu_custom_call.1} parent=47 // pred_check
          %p288 = pneg %p46
        $region50: #{tpu_custom_call.1} parent=47 // pred_check_branch
          %290 = sbr.rel (%p288) target = $region52
        $region51: #{tpu_custom_call.1} parent=47 // pred_region
          %291 = dma.done %s284, 512
        $region52: #{tpu_custom_call.1} parent=47 // pred_fallthru
          _
        // Predicated region
        $region53: #{tpu_custom_call.1} parent=47 // pred_check
          %p292 = pneg %p67
        $region54: #{tpu_custom_call.1} parent=47 // pred_check_branch
          %294 = sbr.rel (%p292) target = $region56
        $region55: #{tpu_custom_call.1} parent=47 // pred_region
          %295 = dma.done [#allocation6], 1024
        $region56: #{tpu_custom_call.1} parent=47 // pred_fallthru
          _
        // Predicated region
        $region57: #{tpu_custom_call.1} parent=47 // pred_check
          %p296 = pneg %p109
        $region58: #{tpu_custom_call.1} parent=47 // pred_check_branch
          %298 = sbr.rel (%p296) target = $region60
        $region59: #{tpu_custom_call.1} parent=47 // pred_region
          %299 = dma.done [#allocation6], 1024
        $region60: #{tpu_custom_call.1} parent=47 // pred_fallthru
          _
        %s300 = sand.u32 %s33, 1
        %s301 = scalar_lea.sflag [#allocation3], %s300
        %s302 = sand.u32 %s33, 1
        %s303 = smul.addr %s302, 32
        %s304 = scalar_lea.vmem [#allocation2], %s303
        %p305 = pneg %p46
        %p306 = pneg %p43
        %p307 = pneg %p67
        %p308 = pneg %p64
        %p309 = pneg %p88
        %p310 = pneg %p85
        %p311 = pneg %p109
        %p312 = pneg %p106
        %p313 = pneg %p130
        %p314 = pneg %p127
        %p315 = pneg %p151
        %p316 = pneg %p148
        %p317 = pneg %p172
        %p318 = pneg %p169
        %p319 = pneg %p198
        %p320 = pneg %p195
        %s321 = sand.u32 %s185, 1
        %s322 = scalar_lea.sflag [#allocation4], %s321
        %s323 = sand.u32 %s185, 1
        %s324 = smul.addr %s323, 32
        %s325 = scalar_lea.vmem [#allocation8], %s324
        %s326 = smul.u32 4, %s25
        %s327 = smul.u32 4, %s25
        %v329 = vld [vmem:[%s287] sm:$0xff]
        %v330 = vld [vmem:[%s287 + $0x8] sm:$0xff]
        %v331 = vld [vmem:[%s287 + $0x10] sm:$0xff]
        %v332 = vld [vmem:[%s287 + $0x18] sm:$0xff]
        %v333 = vpack.c.bf16 %v330, %v329
        %v334 = vpack.c.bf16 %v332, %v331
        %v335 = vld [vmem:[#allocation5] sm:$0xf]
        %v336 = vld [vmem:[#allocation5 + $0x4] sm:$0xf]
        %v337 = vld [vmem:[#allocation5 + $0x8] sm:$0xf]
        %v338 = vld [vmem:[#allocation5 + $0xc] sm:$0xf]
        %v339 = vld [vmem:[#allocation5 + $0x10] sm:$0xf]
        %v340 = vld [vmem:[#allocation5 + $0x14] sm:$0xf]
        %v341 = vld [vmem:[#allocation5 + $0x18] sm:$0xf]
        %v342 = vld [vmem:[#allocation5 + $0x1c] sm:$0xf]
        %v343 = vld [vmem:[#allocation5 + $0x20] sm:$0xf]
        %v344 = vld [vmem:[#allocation5 + $0x24] sm:$0xf]
        %v345 = vld [vmem:[#allocation5 + $0x28] sm:$0xf]
        %v346 = vld [vmem:[#allocation5 + $0x2c] sm:$0xf]
        %v347 = vld [vmem:[#allocation5 + $0x30] sm:$0xf]
        %v348 = vld [vmem:[#allocation5 + $0x34] sm:$0xf]
        %v349 = vld [vmem:[#allocation5 + $0x38] sm:$0xf]
        %v350 = vld [vmem:[#allocation5 + $0x3c] sm:$0xf]
        %v351 = vld [vmem:[%s2] sm:$0x1]
        %v353 = vlaneseq
        %v354 = vshrl.u32 %v353, 7
        %v355 = vsub.s32 0, %v354
        %v356 = vrot.slane %v351, %v355
        %v374 = vunpack.c.l.b16 %v335
        %v375 = vunpack.c.l.b16 %v336
        %v376 = vunpack.c.l.b16 %v337
        %v377 = vunpack.c.l.b16 %v338
        %v378 = vunpack.c.l.b16 %v339
        %v379 = vunpack.c.l.b16 %v340
        %v380 = vunpack.c.l.b16 %v341
        %v381 = vunpack.c.l.b16 %v342
        %v382 = vunpack.c.l.b16 %v343
        %v383 = vunpack.c.l.b16 %v344
        %v384 = vunpack.c.l.b16 %v345
        %v385 = vunpack.c.l.b16 %v346
        %v386 = vunpack.c.l.b16 %v347
        %v387 = vunpack.c.l.b16 %v348
        %v388 = vunpack.c.l.b16 %v349
        %v389 = vunpack.c.l.b16 %v350
        %v390 = vpack.c.b16 %v375, %v374
        %v391 = vpack.c.b16 %v377, %v376
        %v392 = vpack.c.b16 %v379, %v378
        %v393 = vpack.c.b16 %v381, %v380
        %v394 = vpack.c.b16 %v383, %v382
        %v395 = vpack.c.b16 %v385, %v384
        %v396 = vpack.c.b16 %v387, %v386
        %v397 = vpack.c.b16 %v389, %v388
        %406 = vmatprep.subr.bf16.mxu0 0
        %407 = vmatpush1.bf16.msra.mxu0 %v390
        %408 = vmatprep.subr.bf16.mxu0 0
        %409 = vmatpush1.bf16.msra.mxu0 %v391
        %410 = vmatprep.subr.bf16.mxu0 0
        %411 = vmatpush1.bf16.msra.mxu0 %v392
        %412 = vmatprep.subr.bf16.mxu0 0
        %413 = vmatpush1.bf16.msra.mxu0 %v393
        %414 = vmatprep.subr.bf16.mxu0 0
        %415 = vmatpush1.bf16.msra.mxu0 %v394
        %416 = vmatprep.subr.bf16.mxu0 0
        %417 = vmatpush1.bf16.msra.mxu0 %v395
        %418 = vmatprep.subr.bf16.mxu0 0
        %419 = vmatpush1.bf16.msra.mxu0 %v396
        %420 = vmatprep.subr.bf16.mxu0 0
        %421 = vmatpush1.bf16.msra.mxu0 %v397
        %422 = vmatprep.subr.bf16.mxu0 0
        %423 = vmatpush1.bf16.msra.mxu0 0
        %424 = vmatprep.subr.bf16.mxu0 0
        %425 = vmatpush1.bf16.msra.mxu0 0
        %426 = vmatprep.subr.bf16.mxu0 0
        %427 = vmatpush1.bf16.msra.mxu0 0
        %428 = vmatprep.subr.bf16.mxu0 0
        %429 = vmatpush1.bf16.msra.mxu0 0
        %430 = vmatprep.subr.bf16.mxu0 0
        %431 = vmatpush1.bf16.msra.mxu0 0
        %432 = vmatprep.subr.bf16.mxu0 0
        %433 = vmatpush1.bf16.msra.mxu0 0
        %434 = vmatprep.subr.bf16.mxu0 0
        %435 = vmatpush1.bf16.msra.mxu0 0
        %436 = vmatprep.subr.bf16.mxu0 0
        %437 = vmatpush1.bf16.msra.mxu0 0
        %438 = vmatprep.mubr.bf16.mxu0 0
        %439 = vmatmul.mubr.bf16.gmra.mrb[0].mxu0 %v333
        %v440 = vpop.f32.mrb[0].mxu0
        %v441 = vadd.f32 %v356, %v440
        %v442 = vpop.f32.mrb[0].mxu0
        %v443 = vpop.f32.mrb[0].mxu0
        %v444 = vadd.f32 %v356, %v443
        %v445 = vpop.f32.mrb[0].mxu0
        %446 = vmatprep.mubr.bf16.mxu0 0
        %447 = vmatmul.mubr.bf16.gmra.mrb[0].mxu0 %v334
        %v448 = vpop.f32.mrb[0].mxu0
        %v449 = vadd.f32 %v356, %v448
        %v450 = vpop.f32.mrb[0].mxu0
        %v451 = vpop.f32.mrb[0].mxu0
        %v452 = vadd.f32 %v356, %v451
        %v453 = vpop.f32.mrb[0].mxu0
        %454 = vdwg.mxu0
        %v455 = vmax.f32 %v441, 0.0
        %v456 = vmax.f32 %v444, 0.0
        %v457 = vmax.f32 %v449, 0.0
        %v458 = vmax.f32 %v452, 0.0
        %v459 = vpack.c.bf16 %v456, %v455
        %v460 = vpack.c.bf16 %v458, %v457
        %v461 = vld [vmem:[#allocation7] sm:$0xf]
        %v462 = vld [vmem:[#allocation7 + $0x4] sm:$0xf]
        %v463 = vld [vmem:[#allocation7 + $0x8] sm:$0xf]
        %v464 = vld [vmem:[#allocation7 + $0xc] sm:$0xf]
        %v465 = vld [vmem:[#allocation7 + $0x10] sm:$0xf]
        %v466 = vld [vmem:[#allocation7 + $0x14] sm:$0xf]
        %v467 = vld [vmem:[#allocation7 + $0x18] sm:$0xf]
        %v468 = vld [vmem:[#allocation7 + $0x1c] sm:$0xf]
        %v469 = vld [vmem:[#allocation7 + $0x20] sm:$0xf]
        %v470 = vld [vmem:[#allocation7 + $0x24] sm:$0xf]
        %v471 = vld [vmem:[#allocation7 + $0x28] sm:$0xf]
        %v472 = vld [vmem:[#allocation7 + $0x2c] sm:$0xf]
        %v473 = vld [vmem:[#allocation7 + $0x30] sm:$0xf]
        %v474 = vld [vmem:[#allocation7 + $0x34] sm:$0xf]
        %v475 = vld [vmem:[#allocation7 + $0x38] sm:$0xf]
        %v476 = vld [vmem:[#allocation7 + $0x3c] sm:$0xf]
        %v477 = vld [vmem:[%s4] sm:$0x1]
        %v479 = vlaneseq
        %v480 = vshrl.u32 %v479, 7
        %v481 = vsub.s32 0, %v480
        %v482 = vrot.slane %v477, %v481
        %v500 = vunpack.c.l.b16 %v461
        %v501 = vunpack.c.l.b16 %v462
        %v502 = vunpack.c.l.b16 %v463
        %v503 = vunpack.c.l.b16 %v464
        %v504 = vunpack.c.l.b16 %v465
        %v505 = vunpack.c.l.b16 %v466
        %v506 = vunpack.c.l.b16 %v467
        %v507 = vunpack.c.l.b16 %v468
        %v508 = vunpack.c.l.b16 %v469
        %v509 = vunpack.c.l.b16 %v470
        %v510 = vunpack.c.l.b16 %v471
        %v511 = vunpack.c.l.b16 %v472
        %v512 = vunpack.c.l.b16 %v473
        %v513 = vunpack.c.l.b16 %v474
        %v514 = vunpack.c.l.b16 %v475
        %v515 = vunpack.c.l.b16 %v476
        %v516 = vpack.c.b16 %v501, %v500
        %v517 = vpack.c.b16 %v503, %v502
        %v518 = vpack.c.b16 %v505, %v504
        %v519 = vpack.c.b16 %v507, %v506
        %v520 = vpack.c.b16 %v509, %v508
        %v521 = vpack.c.b16 %v511, %v510
        %v522 = vpack.c.b16 %v513, %v512
        %v523 = vpack.c.b16 %v515, %v514
        %532 = vmatprep.subr.bf16.mxu0 0
        %533 = vmatpush1.bf16.msra.mxu0 %v516
        %534 = vmatprep.subr.bf16.mxu0 0
        %535 = vmatpush1.bf16.msra.mxu0 %v517
        %536 = vmatprep.subr.bf16.mxu0 0
        %537 = vmatpush1.bf16.msra.mxu0 %v518
        %538 = vmatprep.subr.bf16.mxu0 0
        %539 = vmatpush1.bf16.msra.mxu0 %v519
        %540 = vmatprep.subr.bf16.mxu0 0
        %541 = vmatpush1.bf16.msra.mxu0 %v520
        %542 = vmatprep.subr.bf16.mxu0 0
        %543 = vmatpush1.bf16.msra.mxu0 %v521
        %544 = vmatprep.subr.bf16.mxu0 0
        %545 = vmatpush1.bf16.msra.mxu0 %v522
        %546 = vmatprep.subr.bf16.mxu0 0
        %547 = vmatpush1.bf16.msra.mxu0 %v523
        %548 = vmatprep.subr.bf16.mxu0 0
        %549 = vmatpush1.bf16.msra.mxu0 0
        %550 = vmatprep.subr.bf16.mxu0 0
        %551 = vmatpush1.bf16.msra.mxu0 0
        %552 = vmatprep.subr.bf16.mxu0 0
        %553 = vmatpush1.bf16.msra.mxu0 0
        %554 = vmatprep.subr.bf16.mxu0 0
        %555 = vmatpush1.bf16.msra.mxu0 0
        %556 = vmatprep.subr.bf16.mxu0 0
        %557 = vmatpush1.bf16.msra.mxu0 0
        %558 = vmatprep.subr.bf16.mxu0 0
        %559 = vmatpush1.bf16.msra.mxu0 0
        %560 = vmatprep.subr.bf16.mxu0 0
        %561 = vmatpush1.bf16.msra.mxu0 0
        %562 = vmatprep.subr.bf16.mxu0 0
        %563 = vmatpush1.bf16.msra.mxu0 0
        %564 = vmatprep.mubr.bf16.mxu0 0
        %565 = vmatmul.mubr.bf16.gmra.mrb[0].mxu0 %v459
        %v566 = vpop.f32.mrb[0].mxu0
        %v567 = vadd.f32 %v482, %v566
        %v568 = vpop.f32.mrb[0].mxu0
        %v569 = vpop.f32.mrb[0].mxu0
        %v570 = vadd.f32 %v482, %v569
        %v571 = vpop.f32.mrb[0].mxu0
        %572 = vmatprep.mubr.bf16.mxu0 0
        %573 = vmatmul.mubr.bf16.gmra.mrb[0].mxu0 %v460
        %v574 = vpop.f32.mrb[0].mxu0
        %v575 = vadd.f32 %v482, %v574
        %v576 = vpop.f32.mrb[0].mxu0
        %v577 = vpop.f32.mrb[0].mxu0
        %v578 = vadd.f32 %v482, %v577
        %v579 = vpop.f32.mrb[0].mxu0
        %580 = vdwg.mxu0
        %581 = vadd.xlane.f32.xlu0 %v567
        %v582 = vpop.xlane.xlu0 %581
        %583 = vadd.xlane.f32.xlu0 %v570
        %v584 = vpop.xlane.xlu0 %583
        %585 = vadd.xlane.f32.xlu0 %v575
        %v586 = vpop.xlane.xlu0 %585
        %587 = vadd.xlane.f32.xlu0 %v578
        %v588 = vpop.xlane.xlu0 %587
        %v589 = vrcp.pop 128.0
        %v590 = vmul.f32 %v582, %v589
        %v591 = vmul.f32 %v584, %v589
        %v592 = vmul.f32 %v586, %v589
        %v593 = vmul.f32 %v588, %v589
        %v594 = vsub.f32 %v567, %v590
        %v595 = vsub.f32 %v570, %v591
        %v596 = vsub.f32 %v575, %v592
        %v597 = vsub.f32 %v578, %v593
        %v598 = vmul.f32 %v594, %v594
        %v599 = vmul.f32 %v595, %v595
        %v600 = vmul.f32 %v596, %v596
        %v601 = vmul.f32 %v597, %v597
        %602 = vadd.xlane.f32.xlu0 %v598
        %v603 = vpop.xlane.xlu0 %602
        %604 = vadd.xlane.f32.xlu0 %v599
        %v605 = vpop.xlane.xlu0 %604
        %606 = vadd.xlane.f32.xlu0 %v600
        %v607 = vpop.xlane.xlu0 %606
        %608 = vadd.xlane.f32.xlu0 %v601
        %v609 = vpop.xlane.xlu0 %608
        %v610 = vmul.f32 %v603, %v589
        %v611 = vmul.f32 %v605, %v589
        %v612 = vmul.f32 %v607, %v589
        %v613 = vmul.f32 %v609, %v589
        %v614 = vld [vmem:[%s5] sm:$0x1]
        %v615 = vadd.f32 %v610, 1e-05
        %v616 = vadd.f32 %v611, 1e-05
        %v617 = vadd.f32 %v612, 1e-05
        %v618 = vadd.f32 %v613, 1e-05
        %v619 = vrsqrt.pop %v615
        %v620 = vrsqrt.pop %v616
        %v621 = vrsqrt.pop %v617
        %v622 = vrsqrt.pop %v618
        %v624 = vlaneseq
        %v625 = vshrl.u32 %v624, 7
        %v626 = vsub.s32 0, %v625
        %v627 = vrot.slane %v614, %v626
        %v629 = vmul.f32 %v627, %v619
        %v630 = vmul.f32 %v627, %v620
        %v631 = vmul.f32 %v627, %v621
        %v632 = vmul.f32 %v627, %v622
        %v633 = vmul.f32 %v594, %v629
        %v634 = vmul.f32 %v595, %v630
        %v635 = vmul.f32 %v596, %v631
        %v636 = vmul.f32 %v597, %v632
        %v637 = vld [vmem:[%s6] sm:$0x1]
        %v639 = vlaneseq
        %v640 = vshrl.u32 %v639, 7
        %v641 = vsub.s32 0, %v640
        %v642 = vrot.slane %v637, %v641
        %v644 = vadd.f32 %v633, %v642
        %v645 = vadd.f32 %v634, %v642
        %v646 = vadd.f32 %v635, %v642
        %v647 = vadd.f32 %v636, %v642
        %648 = vst [vmem:[%s325] sm:$0xff] %v644
        %649 = vst [vmem:[%s325 + $0x8] sm:$0xff] %v645
        %650 = vst [vmem:[%s325 + $0x10] sm:$0xff] %v646
        %651 = vst [vmem:[%s325 + $0x18] sm:$0xff] %v647
        %s652 = sand.u32 %s185, 1
        %s653 = scalar_lea.sflag [#allocation4], %s652
        %s654 = sand.u32 %s185, 1
        %s655 = smul.addr %s654, 32
        %s656 = scalar_lea.vmem [#allocation8], %s655
        // Predicated region
        $region61: #{tpu_custom_call.1} parent=47 // pred_check
          %p657 = pneg %p195
        $region62: #{tpu_custom_call.1} parent=47 // pred_check_branch
          %659 = sbr.rel (%p657) target = $region64
        $region63: #{tpu_custom_call.1} parent=47 // pred_region
          %s660 = smul.u32 4, %s25
          %s662 = ssub.s32 512, 512
          %663 = vsyncadd %s653, %s662
          %s664 = smul.addr %s660, 128
          %s665 = scalar_lea.hbm %s7, %s664
          %s666 = sshll.u32 %s656, 4
          %s667 = int_to_ptr.vmem [resolvable:$true] %s666
          %672 = dma.vmem_to_hbm [thread:$0]  %s667, 512, %s665, %s653, 128, 128, 8
        $region64: #{tpu_custom_call.1} parent=47 // pred_fallthru
          _
      $region48: #{tpu_custom_call.1} parent=5 // pred_fallthru
        _
      %p673 = scmp.le.s32.totalorder 2, %s20
      // Predicated region
      $region65: #{tpu_custom_call.1} parent=5 // pred_check
        %p674 = pneg %p673
      $region66: #{tpu_custom_call.1} parent=5 // pred_check_branch
        %676 = sbr.rel (%p674) target = $region68
      $region67: #{tpu_custom_call.1} parent=5 // pred_region
        %s677 = ssub.s32 %s20, 2
        // Predicated region
        $region69: #{tpu_custom_call.1} parent=67 // pred_check
          %p678 = pneg %p201
        $region70: #{tpu_custom_call.1} parent=67 // pred_check_branch
          %680 = sbr.rel (%p678) target = $region72
        $region71: #{tpu_custom_call.1} parent=67 // pred_region
          %s681 = sand.u32 %s186, 1
          %s682 = scalar_lea.sflag [#allocation4], %s681
          %s683 = sand.u32 %s186, 1
          %s684 = smul.addr %s683, 32
          %s685 = scalar_lea.vmem [#allocation8], %s684
          %686 = dma.done %s682, 512
        $region72: #{tpu_custom_call.1} parent=67 // pred_fallthru
          _
      $region68: #{tpu_custom_call.1} parent=5 // pred_fallthru
        _
    $region6: #{tpu_custom_call.1} parent=1 // loop_footer
      %s24 = sadd.s32 1, %s20
    $region7: #{tpu_custom_call.1} parent=1 // loop_footer_branch
      %19 = sbr.rel target = $region3
    $region8: #{tpu_custom_call.1} parent=1 // loop_exit
      _
    %687 = vsyncpa [#allocation3], 1
    %s688 = scalar_lea.sflag [#allocation3], 1
    %689 = vsyncpa %s688, 1
    %690 = vsyncpa [#allocation6], 1
    %691 = vsyncpa [#allocation4], 1
    %s692 = scalar_lea.sflag [#allocation4], 1
    %693 = vsyncpa %s692, 1

</llo_original>
